<compile_context>
chip_gen: v7x
topology: tpu7x:2x2x1
jax: 0.10.0
libtpu: 0.0.40
codegen_flags: <defaults>
</compile_context>

<pallas_src>
import functools
import math

import jax
import jax.numpy as jnp
from jax.experimental import pallas as pl
from jax.experimental.pallas import tpu as pltpu


# ----------------------------- helpers -----------------------------

def _round_up(x, m):
    return (x + m - 1) // m * m


def _erf(x):
    # Abramowitz & Stegun 7.1.26 polynomial erf, |abs err| <= 1.5e-7.
    # Hand-rolled (instead of lax.erf) to guarantee Mosaic lowering; the
    # divide is routed to the EUP via approx reciprocal.
    a1, a2, a3, a4, a5 = (0.254829592, -0.284496736, 1.421413741,
                          -1.453152027, 1.061405429)
    p = 0.3275911
    sign = jnp.where(x >= 0.0, 1.0, -1.0)
    ax = jnp.abs(x)
    t = pl.reciprocal(1.0 + p * ax, approx=True)
    poly = ((((a5 * t + a4) * t + a3) * t + a2) * t + a1) * t
    return sign * (1.0 - poly * jnp.exp(-ax * ax))


def _gelu_exact(x):
    # nn.GELU() default (exact, erf-based), computed in f32 on the VPU/EUP.
    return 0.5 * x * (1.0 + _erf(x * (1.0 / math.sqrt(2.0))))


# ----------------------------- Pallas kernel -----------------------------

def feedforward_kernel(x_ref, w1_ref, b1_ref, w2_ref, b2_ref,
                       lnw_ref, lnb_ref, mask_ref, o_ref, *, d_model, eps):
    """Fused Linear -> GELU -> Linear -> residual LayerNorm on a (TM, Dp) tile.

    Lanes >= d_model are zero padding; they stay exactly zero through both
    matmuls (padded weight rows/cols, biases and LN params are zero,
    gelu(0) == 0) and are removed from the LayerNorm statistics by the
    precomputed 0/1 lane mask.
    """
    x = x_ref[...]                                                 # (TM, Dp) f32

    # bf16 operands -> MXU fast path, f32 accumulation.
    h = jnp.dot(x.astype(jnp.bfloat16), w1_ref[...],
                preferred_element_type=jnp.float32) + b1_ref[...]  # (TM, Hp) f32
    h = _gelu_exact(h)
    ff = jnp.dot(h.astype(jnp.bfloat16), w2_ref[...],
                 preferred_element_type=jnp.float32) + b2_ref[...]  # (TM, Dp) f32

    s = ff + x                                                      # residual (f32)
    inv_d = 1.0 / d_model
    mu = jnp.sum(s, axis=-1, keepdims=True) * inv_d                 # padded lanes are 0
    centered = (s - mu) * mask_ref[...]                             # mask padded lanes
    var = jnp.sum(centered * centered, axis=-1, keepdims=True) * inv_d
    y = centered * jax.lax.rsqrt(var + eps) * lnw_ref[...] + lnb_ref[...]
    o_ref[...] = y.astype(o_ref.dtype)


# ----------------------------- parameter prep (one-time) -----------------------------

def prepare_ff_params(params):
    """Pad params to lane-dense shapes and cast weights to bf16, once."""
    d_model, inner = params["w1"].shape
    dp = _round_up(d_model, 128)
    hp = _round_up(inner, 128)
    f32 = jnp.float32
    prep = {
        "w1": jnp.pad(params["w1"].astype(f32),
                      ((0, dp - d_model), (0, hp - inner))).astype(jnp.bfloat16),
        "b1": jnp.pad(params["b1"].astype(f32), ((0, 0), (0, hp - inner))),
        "w2": jnp.pad(params["w2"].astype(f32),
                      ((0, hp - inner), (0, dp - d_model))).astype(jnp.bfloat16),
        "b2": jnp.pad(params["b2"].astype(f32), ((0, 0), (0, dp - d_model))),
        "lnw": jnp.pad(params["ln_w"].astype(f32), ((0, 0), (0, dp - d_model))),
        "lnb": jnp.pad(params["ln_b"].astype(f32), ((0, 0), (0, dp - d_model))),
        "mask": (jnp.arange(dp) < d_model).astype(f32)[None, :],
        "d_model": d_model, "dp": dp, "hp": hp,
    }
    return prep


# ----------------------------- wrapper -----------------------------

def _choose_row_tile(n, block_rows):
    n8 = _round_up(max(n, 1), 8)
    tm = min(block_rows, n8)
    # Keep >= 2 grid steps whenever feasible so the "parallel" axis can split
    # across both v7x TensorCores (no-op on single-TC v5e/v6e).
    if n8 >= 16 and n8 <= tm:
        tm = _round_up(pl.cdiv(n8, 2), 8)
    n_pad = _round_up(n8, tm)
    return tm, n_pad


def feed_forward(x, prep, *, eps=1e-12, block_rows=512):
    """Applies the fused FeedForward block to x of shape (..., d_model)."""
    *lead, d_model = x.shape
    assert d_model == prep["d_model"]
    dp = prep["dp"]

    n = 1
    for s in lead:
        n *= s
    x2 = x.reshape(n, d_model).astype(jnp.float32)

    tm, n_pad = _choose_row_tile(n, block_rows)
    # TODO(synk): if the surrounding layers can produce/consume the padded
    # (n_pad, dp) layout directly, this pad and the final slice (one extra
    # HBM pass each over the activations) can be dropped.
    x_p = jnp.pad(x2, ((0, n_pad - n), (0, dp - d_model)))

    def resident_spec(a):
        # Grid-invariant operand: constant index_map, single-buffered.
        nd = a.ndim
        return pl.BlockSpec(a.shape, lambda i, _nd=nd: (0,) * _nd,
                            pipeline_mode=pl.Buffered(1))

    # TODO(synk): for very large d_model (weights approaching v7x's 64 MiB per-TC
    # VMEM) add a hidden-dim grid axis with a VMEM accumulator instead of
    # keeping both weight matrices fully resident.
    out = pl.pallas_call(
        functools.partial(feedforward_kernel, d_model=d_model, eps=eps),
        out_shape=jax.ShapeDtypeStruct((n_pad, dp), jnp.float32),
        grid=(n_pad // tm,),
        in_specs=[pl.BlockSpec((tm, dp), lambda i: (i, 0)),
                  resident_spec(prep["w1"]), resident_spec(prep["b1"]),
                  resident_spec(prep["w2"]), resident_spec(prep["b2"]),
                  resident_spec(prep["lnw"]), resident_spec(prep["lnb"]),
                  resident_spec(prep["mask"])],
        out_specs=pl.BlockSpec((tm, dp), lambda i: (i, 0)),
        compiler_params=pltpu.CompilerParams(
            dimension_semantics=("parallel",),      # independent token tiles
            vmem_limit_bytes=32 * 1024 * 1024),
    )(x_p, prep["w1"], prep["b1"], prep["w2"], prep["b2"],
      prep["lnw"], prep["lnb"], prep["mask"])

    return out[:n, :d_model].reshape(x.shape)


# ----------------------------- pure-JAX reference -----------------------------

def feed_forward_ref(x, params, eps=1e-12):
    hi = jax.lax.Precision.HIGHEST
    h = jnp.dot(x, params["w1"], precision=hi) + params["b1"][0]
    h = jax.nn.gelu(h, approximate=False)
    h = jnp.dot(h, params["w2"], precision=hi) + params["b2"][0]
    s = h + x
    mu = jnp.mean(s, axis=-1, keepdims=True)
    var = jnp.mean(jnp.square(s - mu), axis=-1, keepdims=True)
    return (s - mu) / jnp.sqrt(var + eps) * params["ln_w"][0] + params["ln_b"][0]


# ----------------------------- main -----------------------------

if __name__ == "__main__":
    # Small shapes consistent with the module (d_model=200, inner=4*d_model),
    # batch=2, seq=8.  Dropout = identity (eval mode).
    B, L, d_model, inner = 2, 8, 200, 800

    key = jax.random.PRNGKey(0)
    kx, k1, k2, k3, k4, k5, k6 = jax.random.split(key, 7)
    x = jax.random.normal(kx, (B, L, d_model), jnp.float32)

    # Linear weights stored pre-transposed as (in_features, out_features).
    params = {
        "w1": 0.02 * jax.random.normal(k1, (d_model, inner), jnp.float32),
        "b1": 0.02 * jax.random.normal(k2, (1, inner), jnp.float32),
        "w2": 0.02 * jax.random.normal(k3, (inner, d_model), jnp.float32),
        "b2": 0.02 * jax.random.normal(k4, (1, d_model), jnp.float32),
        "ln_w": 1.0 + 0.02 * jax.random.normal(k5, (1, d_model), jnp.float32),
        "ln_b": 0.02 * jax.random.normal(k6, (1, d_model), jnp.float32),
    }

    prep = prepare_ff_params(params)          # one-time pad + bf16 cast
    out = feed_forward(x, prep)
    jax.block_until_ready(out)

    assert out.shape == (B, L, d_model), out.shape
    assert bool(jnp.all(jnp.isfinite(out)))

    ref = feed_forward_ref(x, params)
    max_err = float(jnp.max(jnp.abs(out - ref)))
    # bf16 MXU operands (f32 accumulation) vs. the f32 reference.
    assert max_err < 5e-3, f"max |kernel - ref| = {max_err}"

    # TODO(synk): training-time Dropout has no forward-pass effect in eval mode
    # and is treated as identity inside the kernel.
    print("KERNEL_OK")
</pallas_src>

<mosaic_0001>
module attributes {stable_mosaic.version = 11 : i64} {
  func.func @feedforward_kernel(%arg0: i32, %arg1: memref<8x256xf32, #tpu.memory_space<vmem>>, %arg2: memref<256x896xbf16, #tpu.memory_space<vmem>>, %arg3: memref<1x896xf32, #tpu.memory_space<vmem>>, %arg4: memref<896x256xbf16, #tpu.memory_space<vmem>>, %arg5: memref<1x256xf32, #tpu.memory_space<vmem>>, %arg6: memref<1x256xf32, #tpu.memory_space<vmem>>, %arg7: memref<1x256xf32, #tpu.memory_space<vmem>>, %arg8: memref<1x256xf32, #tpu.memory_space<vmem>>, %arg9: memref<8x256xf32, #tpu.memory_space<vmem>>) attributes {dimension_semantics = [#tpu.dimension_semantics<parallel>], iteration_bounds = array<i64: 2>, scalar_prefetch = 0 : i64, scratch_operands = 0 : i64, tpu.core_type = #tpu.core_type<tc>, window_params = [{transform_indices = @transform_0, window_bounds = array<i64: 8, 256>}, {pipeline_mode = #tpu.pipeline_mode<synchronous>, transform_indices = @transform_1, window_bounds = array<i64: 256, 896>}, {pipeline_mode = #tpu.pipeline_mode<synchronous>, transform_indices = @transform_2, window_bounds = array<i64: 1, 896>}, {pipeline_mode = #tpu.pipeline_mode<synchronous>, transform_indices = @transform_3, window_bounds = array<i64: 896, 256>}, {pipeline_mode = #tpu.pipeline_mode<synchronous>, transform_indices = @transform_4, window_bounds = array<i64: 1, 256>}, {pipeline_mode = #tpu.pipeline_mode<synchronous>, transform_indices = @transform_5, window_bounds = array<i64: 1, 256>}, {pipeline_mode = #tpu.pipeline_mode<synchronous>, transform_indices = @transform_6, window_bounds = array<i64: 1, 256>}, {pipeline_mode = #tpu.pipeline_mode<synchronous>, transform_indices = @transform_7, window_bounds = array<i64: 1, 256>}, {transform_indices = @transform_8, window_bounds = array<i64: 8, 256>}]} {
    %c0 = arith.constant 0 : index
    %c0_0 = arith.constant 0 : index
    %0 = vector.load %arg1[%c0, %c0_0] : memref<8x256xf32, #tpu.memory_space<vmem>>, vector<8x256xf32>
    %1 = arith.truncf %0 : vector<8x256xf32> to vector<8x256xbf16>
    %c0_1 = arith.constant 0 : index
    %c0_2 = arith.constant 0 : index
    %2 = vector.load %arg2[%c0_1, %c0_2] : memref<256x896xbf16, #tpu.memory_space<vmem>>, vector<256x896xbf16>
    %cst = arith.constant dense<0.000000e+00> : vector<8x896xf32>
    %3 = tpu.matmul %1, %2, %cst {dimension_numbers = #tpu.dot_dimension_numbers<[1], [0], [0], [1], [0, 0, 1, 1], [], []>} : vector<8x256xbf16>, vector<256x896xbf16>, vector<8x896xf32> -> vector<8x896xf32>
    %c0_3 = arith.constant 0 : index
    %c0_4 = arith.constant 0 : index
    %4 = vector.load %arg3[%c0_3, %c0_4] : memref<1x896xf32, #tpu.memory_space<vmem>>, vector<1x896xf32>
    %5 = vector.broadcast %4 : vector<1x896xf32> to vector<8x896xf32>
    %6 = arith.addf %3, %5 : vector<8x896xf32>
    %cst_5 = arith.constant 5.000000e-01 : f32
    %7 = vector.broadcast %cst_5 : f32 to vector<8x896xf32>
    %8 = arith.mulf %7, %6 : vector<8x896xf32>
    %cst_6 = arith.constant 0.707106769 : f32
    %9 = vector.broadcast %cst_6 : f32 to vector<8x896xf32>
    %10 = arith.mulf %6, %9 : vector<8x896xf32>
    %cst_7 = arith.constant 0.000000e+00 : f32
    %11 = vector.broadcast %cst_7 : f32 to vector<8x896xf32>
    %12 = arith.cmpf oge, %10, %11 : vector<8x896xf32>
    %cst_8 = arith.constant 1.000000e+00 : f32
    %cst_9 = arith.constant -1.000000e+00 : f32
    %13 = vector.broadcast %cst_8 : f32 to vector<8x896xf32>
    %14 = vector.broadcast %cst_9 : f32 to vector<8x896xf32>
    %15 = arith.select %12, %13, %14 : vector<8x896xi1>, vector<8x896xf32>
    %16 = math.absf %10 : vector<8x896xf32>
    %cst_10 = arith.constant 0.327591091 : f32
    %17 = vector.broadcast %cst_10 : f32 to vector<8x896xf32>
    %18 = arith.mulf %17, %16 : vector<8x896xf32>
    %cst_11 = arith.constant 1.000000e+00 : f32
    %19 = vector.broadcast %cst_11 : f32 to vector<8x896xf32>
    %20 = arith.addf %19, %18 : vector<8x896xf32>
    %21 = tpu.reciprocal %20 {approx = true} : vector<8x896xf32> -> vector<8x896xf32>
    %cst_12 = arith.constant 1.06140542 : f32
    %22 = vector.broadcast %cst_12 : f32 to vector<8x896xf32>
    %23 = arith.mulf %22, %21 : vector<8x896xf32>
    %cst_13 = arith.constant -1.45315206 : f32
    %24 = vector.broadcast %cst_13 : f32 to vector<8x896xf32>
    %25 = arith.addf %23, %24 : vector<8x896xf32>
    %26 = arith.mulf %25, %21 : vector<8x896xf32>
    %cst_14 = arith.constant 1.42141378 : f32
    %27 = vector.broadcast %cst_14 : f32 to vector<8x896xf32>
    %28 = arith.addf %26, %27 : vector<8x896xf32>
    %29 = arith.mulf %28, %21 : vector<8x896xf32>
    %cst_15 = arith.constant -0.284496725 : f32
    %30 = vector.broadcast %cst_15 : f32 to vector<8x896xf32>
    %31 = arith.addf %29, %30 : vector<8x896xf32>
    %32 = arith.mulf %31, %21 : vector<8x896xf32>
    %cst_16 = arith.constant 0.254829586 : f32
    %33 = vector.broadcast %cst_16 : f32 to vector<8x896xf32>
    %34 = arith.addf %32, %33 : vector<8x896xf32>
    %35 = arith.mulf %34, %21 : vector<8x896xf32>
    %cst_17 = arith.constant 0.000000e+00 : f32
    %36 = vector.broadcast %cst_17 : f32 to vector<8x896xf32>
    %37 = arith.subf %36, %16 : vector<8x896xf32>
    %38 = arith.mulf %37, %16 : vector<8x896xf32>
    %39 = math.exp %38 : vector<8x896xf32>
    %40 = arith.mulf %35, %39 : vector<8x896xf32>
    %cst_18 = arith.constant 1.000000e+00 : f32
    %41 = vector.broadcast %cst_18 : f32 to vector<8x896xf32>
    %42 = arith.subf %41, %40 : vector<8x896xf32>
    %43 = arith.mulf %15, %42 : vector<8x896xf32>
    %cst_19 = arith.constant 1.000000e+00 : f32
    %44 = vector.broadcast %cst_19 : f32 to vector<8x896xf32>
    %45 = arith.addf %44, %43 : vector<8x896xf32>
    %46 = arith.mulf %8, %45 : vector<8x896xf32>
    %47 = arith.truncf %46 : vector<8x896xf32> to vector<8x896xbf16>
    %c0_20 = arith.constant 0 : index
    %c0_21 = arith.constant 0 : index
    %48 = vector.load %arg4[%c0_20, %c0_21] : memref<896x256xbf16, #tpu.memory_space<vmem>>, vector<896x256xbf16>
    %cst_22 = arith.constant dense<0.000000e+00> : vector<8x256xf32>
    %49 = tpu.matmul %47, %48, %cst_22 {dimension_numbers = #tpu.dot_dimension_numbers<[1], [0], [0], [1], [0, 0, 1, 1], [], []>} : vector<8x896xbf16>, vector<896x256xbf16>, vector<8x256xf32> -> vector<8x256xf32>
    %c0_23 = arith.constant 0 : index
    %c0_24 = arith.constant 0 : index
    %50 = vector.load %arg5[%c0_23, %c0_24] : memref<1x256xf32, #tpu.memory_space<vmem>>, vector<1x256xf32>
    %51 = vector.broadcast %50 : vector<1x256xf32> to vector<8x256xf32>
    %52 = arith.addf %49, %51 : vector<8x256xf32>
    %53 = arith.addf %52, %0 : vector<8x256xf32>
    %cst_25 = arith.constant dense<0.000000e+00> : vector<8xf32>
    %54 = vector.multi_reduction <add>, %53, %cst_25 [1] : vector<8x256xf32> to vector<8xf32>
    %55 = vector.shape_cast %54 : vector<8xf32> to vector<8x1xf32>
    %cst_26 = arith.constant 5.000000e-03 : f32
    %56 = vector.broadcast %cst_26 : f32 to vector<8x1xf32>
    %57 = arith.mulf %55, %56 : vector<8x1xf32>
    %58 = vector.broadcast %57 : vector<8x1xf32> to vector<8x256xf32>
    %59 = arith.subf %53, %58 : vector<8x256xf32>
    %c0_27 = arith.constant 0 : index
    %c0_28 = arith.constant 0 : index
    %60 = vector.load %arg8[%c0_27, %c0_28] : memref<1x256xf32, #tpu.memory_space<vmem>>, vector<1x256xf32>
    %61 = vector.broadcast %60 : vector<1x256xf32> to vector<8x256xf32>
    %62 = arith.mulf %59, %61 : vector<8x256xf32>
    %63 = arith.mulf %62, %62 : vector<8x256xf32>
    %cst_29 = arith.constant dense<0.000000e+00> : vector<8xf32>
    %64 = vector.multi_reduction <add>, %63, %cst_29 [1] : vector<8x256xf32> to vector<8xf32>
    %65 = vector.shape_cast %64 : vector<8xf32> to vector<8x1xf32>
    %cst_30 = arith.constant 5.000000e-03 : f32
    %66 = vector.broadcast %cst_30 : f32 to vector<8x1xf32>
    %67 = arith.mulf %65, %66 : vector<8x1xf32>
    %cst_31 = arith.constant 9.99999996E-13 : f32
    %68 = vector.broadcast %cst_31 : f32 to vector<8x1xf32>
    %69 = arith.addf %67, %68 : vector<8x1xf32>
    %70 = math.rsqrt %69 : vector<8x1xf32>
    %71 = vector.broadcast %70 : vector<8x1xf32> to vector<8x256xf32>
    %72 = arith.mulf %62, %71 : vector<8x256xf32>
    %c0_32 = arith.constant 0 : index
    %c0_33 = arith.constant 0 : index
    %73 = vector.load %arg6[%c0_32, %c0_33] : memref<1x256xf32, #tpu.memory_space<vmem>>, vector<1x256xf32>
    %74 = vector.broadcast %73 : vector<1x256xf32> to vector<8x256xf32>
    %75 = arith.mulf %72, %74 : vector<8x256xf32>
    %c0_34 = arith.constant 0 : index
    %c0_35 = arith.constant 0 : index
    %76 = vector.load %arg7[%c0_34, %c0_35] : memref<1x256xf32, #tpu.memory_space<vmem>>, vector<1x256xf32>
    %77 = vector.broadcast %76 : vector<1x256xf32> to vector<8x256xf32>
    %78 = arith.addf %75, %77 : vector<8x256xf32>
    %c0_36 = arith.constant 0 : index
    %c0_37 = arith.constant 0 : index
    %79 = vector.load %arg9[%c0_36, %c0_37] : memref<8x256xf32, #tpu.memory_space<vmem>>, vector<8x256xf32>
    tpu.vector_store %arg9[%c0_36, %c0_37], %78 {strides = array<i32>} : memref<8x256xf32, #tpu.memory_space<vmem>>, vector<8x256xf32>,
    return
  }
  func.func @transform_0(%arg0: i32) -> (i32, i32) {
    %c0_i32 = arith.constant 0 : i32
    %c0_i32_0 = arith.constant 0 : i32
    return %arg0, %c0_i32 : i32, i32
  }
  func.func @transform_1(%arg0: i32) -> (i32, i32) {
    %c0_i32 = arith.constant 0 : i32
    %c0_i32_0 = arith.constant 0 : i32
    %c0_i32_1 = arith.constant 0 : i32
    return %c0_i32, %c0_i32_0 : i32, i32
  }
  func.func @transform_2(%arg0: i32) -> (i32, i32) {
    %c0_i32 = arith.constant 0 : i32
    %c0_i32_0 = arith.constant 0 : i32
    %c0_i32_1 = arith.constant 0 : i32
    return %c0_i32, %c0_i32_0 : i32, i32
  }
  func.func @transform_3(%arg0: i32) -> (i32, i32) {
    %c0_i32 = arith.constant 0 : i32
    %c0_i32_0 = arith.constant 0 : i32
    %c0_i32_1 = arith.constant 0 : i32
    return %c0_i32, %c0_i32_0 : i32, i32
  }
  func.func @transform_4(%arg0: i32) -> (i32, i32) {
    %c0_i32 = arith.constant 0 : i32
    %c0_i32_0 = arith.constant 0 : i32
    %c0_i32_1 = arith.constant 0 : i32
    return %c0_i32, %c0_i32_0 : i32, i32
  }
  func.func @transform_5(%arg0: i32) -> (i32, i32) {
    %c0_i32 = arith.constant 0 : i32
    %c0_i32_0 = arith.constant 0 : i32
    %c0_i32_1 = arith.constant 0 : i32
    return %c0_i32, %c0_i32_0 : i32, i32
  }
  func.func @transform_6(%arg0: i32) -> (i32, i32) {
    %c0_i32 = arith.constant 0 : i32
    %c0_i32_0 = arith.constant 0 : i32
    %c0_i32_1 = arith.constant 0 : i32
    return %c0_i32, %c0_i32_0 : i32, i32
  }
  func.func @transform_7(%arg0: i32) -> (i32, i32) {
    %c0_i32 = arith.constant 0 : i32
    %c0_i32_0 = arith.constant 0 : i32
    %c0_i32_1 = arith.constant 0 : i32
    return %c0_i32, %c0_i32_0 : i32, i32
  }
  func.func @transform_8(%arg0: i32) -> (i32, i32) {
    %c0_i32 = arith.constant 0 : i32
    %c0_i32_0 = arith.constant 0 : i32
    return %arg0, %c0_i32 : i32, i32
  }
}

</mosaic_0001>

<llo_original>
// kernel: tpu_custom_call.1
$region0: #{tpu_custom_call.1}
  #allocation0 [shape = 'u32[]', space=smem, size = 0x4, offset = 0x4, fixed_abs, tag = 'smem constant byte address 0x4 - core index']
  #allocation1 [shape = 'u32[144,128]{1,0:T(1,128)}', space=vmem, size = 0x12000, scoped, tag = 'internal scratch']
  %s0 = inlined_call_operand.hbm [shape: f32[16,256], index: 0, kind: input, shape index: {}]
  %s1 = inlined_call_operand.hbm [shape: bf16[256,896], index: 1, kind: input, shape index: {}]
  %s2 = inlined_call_operand.vmem [shape: f32[1,896], index: 2, kind: input, shape index: {}]
  %s3 = inlined_call_operand.hbm [shape: bf16[896,256], index: 3, kind: input, shape index: {}]
  %s4 = inlined_call_operand.vmem [shape: f32[1,256], index: 4, kind: input, shape index: {}]
  %s5 = inlined_call_operand.vmem [shape: f32[1,256], index: 5, kind: input, shape index: {}]
  %s6 = inlined_call_operand.vmem [shape: f32[1,256], index: 6, kind: input, shape index: {}]
  %s7 = inlined_call_operand.vmem [shape: f32[1,256], index: 7, kind: input, shape index: {}]
  %s8 = inlined_call_operand.hbm [shape: f32[16,256], index: 8, kind: output, shape index: {}]
  %s9 = sld [smem:[#allocation0]]
  $region77: #{tpu_custom_call.1} parent=0
    _
  %s11 = ssub.s32 1, %s9
  %s12 = scalar_select 0, %s11, %s9
  $region1: #{tpu_custom_call.1} parent=0
    #allocation2 [shape = 'u8[16384]{0}', space=vmem, size = 0x4000, scoped, tag = 'input window, operand 0']
    #allocation3 [shape = 's32[2]{0}', space=sflag, size = 0x8, scoped, tag = 'scoped memory for tpu_custom_call.1']
    #allocation4 [shape = 's32[2]{0}', space=sflag, size = 0x8, scoped, tag = 'scoped memory for tpu_custom_call.1']
    #allocation5 [shape = 'u8[458752]{0}', space=vmem, size = 0x70000, scoped, tag = 'input window, operand 1, single buffered']
    #allocation6 [shape = 's32[1]{0}', space=sflag, size = 0x4, scoped, tag = 'scoped memory for tpu_custom_call.1']
    #allocation7 [shape = 'u8[458752]{0}', space=vmem, size = 0x70000, scoped, tag = 'input window, operand 3, single buffered']
    #allocation8 [shape = 'u8[16384]{0}', space=vmem, size = 0x4000, scoped, tag = 'output window, operand 0']
    %13 = vsyncpa [#allocation3], 0
    %s14 = scalar_lea.sflag [#allocation3], 1
    %15 = vsyncpa %s14, 0
    %16 = vsyncpa [#allocation6], 0
    %17 = vsyncpa [#allocation4], 0
    %s18 = scalar_lea.sflag [#allocation4], 1
    %19 = vsyncpa %s18, 0
    loop: start=0, step=1, limit=4
    $region2: #{tpu_custom_call.1} parent=1 // loop_pre_header
      _
    $region3: #{tpu_custom_call.1} parent=1 // loop_header
      %s21 = sphi 0, %s25
      %p22 = scmp.ge.s32.totalorder %s21, 4
      %s31 = sphi 0, %s33
      %s34 = sphi 0, %s31
      %s35 = sphi 0, %s34
      %s51 = sphi 0, %s35
      %s55 = sphi 0, %s55
      %s57 = sphi 0, %s55
      %s58 = sphi 0, %s57
      %s72 = sphi 0, %s58
      %s76 = sphi 0, %s76
      %s78 = sphi 0, %s76
      %s79 = sphi 0, %s78
      %s93 = sphi 0, %s79
      %s97 = sphi 0, %s97
      %s99 = sphi 0, %s97
      %s100 = sphi 0, %s99
      %s114 = sphi 0, %s100
      %s118 = sphi 0, %s118
      %s120 = sphi 0, %s118
      %s121 = sphi 0, %s120
      %s135 = sphi 0, %s121
      %s139 = sphi 0, %s139
      %s141 = sphi 0, %s139
      %s142 = sphi 0, %s141
      %s156 = sphi 0, %s142
      %s160 = sphi 0, %s160
      %s162 = sphi 0, %s160
      %s163 = sphi 0, %s162
      %s177 = sphi 0, %s163
      %s181 = sphi 0, %s181
      %s183 = sphi 0, %s181
      %s184 = sphi 0, %s183
      %s198 = sphi 0, %s184
      %s204 = sphi 0, %s206
      %s207 = sphi 0, %s204
      %s208 = sphi 0, %s207
      %s224 = sphi 0, %s208
    $region4: #{tpu_custom_call.1} parent=1 // loop_header_branch
      %24 = sbr.rel (%p22) target = $region8
    $region5: #{tpu_custom_call.1} parent=1 // loop_body
      %s26 = ssub.s32 %s21, 1
      %s27 = ssub.s32 %s21, 2
      %s28 = sadd.s32 %s21, 1
      %s29 = ssub.s32 %s21, %s28
      %p30 = scmp.eq.s32.totalorder %s29, 0
      %s32 = sadd.s32 %s31, 1
      %s33 = scalar_select %p30, %s31, %s32
      %p36 = pneg %p30
      %p37 = scmp.eq.s32.totalorder %s21, 1
      %p38 = por %p36, %p37
      %p39 = scmp.ne.s32.totalorder %s31, %s34
      %p40 = scmp.eq.s32.totalorder %s21, 0
      %p41 = por %p39, %p40
      %p42 = scmp.ne.s32.totalorder %s31, %s34
      %p43 = scmp.eq.s32.totalorder %s26, 1
      %p44 = por %p42, %p43
      %p45 = scmp.ne.s32.totalorder %s34, %s35
      %p46 = scmp.eq.s32.totalorder %s26, 0
      %p47 = por %p45, %p46
      %p48 = scmp.ne.s32.totalorder %s34, %s35
      %p49 = scmp.eq.s32.totalorder %s27, 1
      %p50 = por %p48, %p49
      %p52 = scmp.ne.s32.totalorder %s35, %s51
      %p53 = scmp.eq.s32.totalorder %s27, 0
      %p54 = por %p52, %p53
      %s56 = sadd.s32 %s55, 1
      %p59 = scmp.eq.s32.totalorder %s21, 1
      %p60 = scmp.ne.s32.totalorder %s55, %s57
      %p61 = scmp.eq.s32.totalorder %s21, 0
      %p62 = por %p60, %p61
      %p63 = scmp.ne.s32.totalorder %s55, %s57
      %p64 = scmp.eq.s32.totalorder %s26, 1
      %p65 = por %p63, %p64
      %p66 = scmp.ne.s32.totalorder %s57, %s58
      %p67 = scmp.eq.s32.totalorder %s26, 0
      %p68 = por %p66, %p67
      %p69 = scmp.ne.s32.totalorder %s57, %s58
      %p70 = scmp.eq.s32.totalorder %s27, 1
      %p71 = por %p69, %p70
      %p73 = scmp.ne.s32.totalorder %s58, %s72
      %p74 = scmp.eq.s32.totalorder %s27, 0
      %p75 = por %p73, %p74
      %s77 = sadd.s32 %s76, 1
      %p80 = scmp.eq.s32.totalorder %s21, 1
      %p81 = scmp.ne.s32.totalorder %s76, %s78
      %p82 = scmp.eq.s32.totalorder %s21, 0
      %p83 = por %p81, %p82
      %p84 = scmp.ne.s32.totalorder %s76, %s78
      %p85 = scmp.eq.s32.totalorder %s26, 1
      %p86 = por %p84, %p85
      %p87 = scmp.ne.s32.totalorder %s78, %s79
      %p88 = scmp.eq.s32.totalorder %s26, 0
      %p89 = por %p87, %p88
      %p90 = scmp.ne.s32.totalorder %s78, %s79
      %p91 = scmp.eq.s32.totalorder %s27, 1
      %p92 = por %p90, %p91
      %p94 = scmp.ne.s32.totalorder %s79, %s93
      %p95 = scmp.eq.s32.totalorder %s27, 0
      %p96 = por %p94, %p95
      %s98 = sadd.s32 %s97, 1
      %p101 = scmp.eq.s32.totalorder %s21, 1
      %p102 = scmp.ne.s32.totalorder %s97, %s99
      %p103 = scmp.eq.s32.totalorder %s21, 0
      %p104 = por %p102, %p103
      %p105 = scmp.ne.s32.totalorder %s97, %s99
      %p106 = scmp.eq.s32.totalorder %s26, 1
      %p107 = por %p105, %p106
      %p108 = scmp.ne.s32.totalorder %s99, %s100
      %p109 = scmp.eq.s32.totalorder %s26, 0
      %p110 = por %p108, %p109
      %p111 = scmp.ne.s32.totalorder %s99, %s100
      %p112 = scmp.eq.s32.totalorder %s27, 1
      %p113 = por %p111, %p112
      %p115 = scmp.ne.s32.totalorder %s100, %s114
      %p116 = scmp.eq.s32.totalorder %s27, 0
      %p117 = por %p115, %p116
      %s119 = sadd.s32 %s118, 1
      %p122 = scmp.eq.s32.totalorder %s21, 1
      %p123 = scmp.ne.s32.totalorder %s118, %s120
      %p124 = scmp.eq.s32.totalorder %s21, 0
      %p125 = por %p123, %p124
      %p126 = scmp.ne.s32.totalorder %s118, %s120
      %p127 = scmp.eq.s32.totalorder %s26, 1
      %p128 = por %p126, %p127
      %p129 = scmp.ne.s32.totalorder %s120, %s121
      %p130 = scmp.eq.s32.totalorder %s26, 0
      %p131 = por %p129, %p130
      %p132 = scmp.ne.s32.totalorder %s120, %s121
      %p133 = scmp.eq.s32.totalorder %s27, 1
      %p134 = por %p132, %p133
      %p136 = scmp.ne.s32.totalorder %s121, %s135
      %p137 = scmp.eq.s32.totalorder %s27, 0
      %p138 = por %p136, %p137
      %s140 = sadd.s32 %s139, 1
      %p143 = scmp.eq.s32.totalorder %s21, 1
      %p144 = scmp.ne.s32.totalorder %s139, %s141
      %p145 = scmp.eq.s32.totalorder %s21, 0
      %p146 = por %p144, %p145
      %p147 = scmp.ne.s32.totalorder %s139, %s141
      %p148 = scmp.eq.s32.totalorder %s26, 1
      %p149 = por %p147, %p148
      %p150 = scmp.ne.s32.totalorder %s141, %s142
      %p151 = scmp.eq.s32.totalorder %s26, 0
      %p152 = por %p150, %p151
      %p153 = scmp.ne.s32.totalorder %s141, %s142
      %p154 = scmp.eq.s32.totalorder %s27, 1
      %p155 = por %p153, %p154
      %p157 = scmp.ne.s32.totalorder %s142, %s156
      %p158 = scmp.eq.s32.totalorder %s27, 0
      %p159 = por %p157, %p158
      %s161 = sadd.s32 %s160, 1
      %p164 = scmp.eq.s32.totalorder %s21, 1
      %p165 = scmp.ne.s32.totalorder %s160, %s162
      %p166 = scmp.eq.s32.totalorder %s21, 0
      %p167 = por %p165, %p166
      %p168 = scmp.ne.s32.totalorder %s160, %s162
      %p169 = scmp.eq.s32.totalorder %s26, 1
      %p170 = por %p168, %p169
      %p171 = scmp.ne.s32.totalorder %s162, %s163
      %p172 = scmp.eq.s32.totalorder %s26, 0
      %p173 = por %p171, %p172
      %p174 = scmp.ne.s32.totalorder %s162, %s163
      %p175 = scmp.eq.s32.totalorder %s27, 1
      %p176 = por %p174, %p175
      %p178 = scmp.ne.s32.totalorder %s163, %s177
      %p179 = scmp.eq.s32.totalorder %s27, 0
      %p180 = por %p178, %p179
      %s182 = sadd.s32 %s181, 1
      %p185 = scmp.eq.s32.totalorder %s21, 1
      %p186 = scmp.ne.s32.totalorder %s181, %s183
      %p187 = scmp.eq.s32.totalorder %s21, 0
      %p188 = por %p186, %p187
      %p189 = scmp.ne.s32.totalorder %s181, %s183
      %p190 = scmp.eq.s32.totalorder %s26, 1
      %p191 = por %p189, %p190
      %p192 = scmp.ne.s32.totalorder %s183, %s184
      %p193 = scmp.eq.s32.totalorder %s26, 0
      %p194 = por %p192, %p193
      %p195 = scmp.ne.s32.totalorder %s183, %s184
      %p196 = scmp.eq.s32.totalorder %s27, 1
      %p197 = por %p195, %p196
      %p199 = scmp.ne.s32.totalorder %s184, %s198
      %p200 = scmp.eq.s32.totalorder %s27, 0
      %p201 = por %p199, %p200
      %s202 = ssub.s32 %s21, %s28
      %p203 = scmp.eq.s32.totalorder %s202, 0
      %s205 = sadd.s32 %s204, 1
      %s206 = scalar_select %p203, %s204, %s205
      %p209 = pneg %p203
      %p210 = scmp.eq.s32.totalorder %s21, 1
      %p211 = por %p209, %p210
      %p212 = scmp.ne.s32.totalorder %s204, %s207
      %p213 = scmp.eq.s32.totalorder %s21, 0
      %p214 = por %p212, %p213
      %p215 = scmp.ne.s32.totalorder %s204, %s207
      %p216 = scmp.eq.s32.totalorder %s26, 1
      %p217 = por %p215, %p216
      %p218 = scmp.ne.s32.totalorder %s207, %s208
      %p219 = scmp.eq.s32.totalorder %s26, 0
      %p220 = por %p218, %p219
      %p221 = scmp.ne.s32.totalorder %s207, %s208
      %p222 = scmp.eq.s32.totalorder %s27, 1
      %p223 = por %p221, %p222
      %p225 = scmp.ne.s32.totalorder %s208, %s224
      %p226 = scmp.eq.s32.totalorder %s27, 0
      %p227 = por %p225, %p226
      %p228 = scmp.le.s32.totalorder 1, %s21
      %p229 = scmp.lt.s32.totalorder %s21, 3
      %p230 = pnand %p228, %p229
      %p231 = pneg %p230
      // Predicated region
      $region9: #{tpu_custom_call.1} parent=5 // pred_check
        _
      $region10: #{tpu_custom_call.1} parent=5 // pred_check_branch
        %233 = sbr.rel (%p230) target = $region12
      $region11: #{tpu_custom_call.1} parent=5 // pred_region
        %s234 = ssub.s32 %s21, 1
        // Predicated region
        $region13: #{tpu_custom_call.1} parent=11 // pred_check
          %p235 = pneg %p68
        $region14: #{tpu_custom_call.1} parent=11 // pred_check_branch
          %237 = sbr.rel (%p235) target = $region16
        $region15: #{tpu_custom_call.1} parent=11 // pred_region
          %s239 = ssub.s32 14336, 14336
          %240 = vsyncadd [#allocation6], %s239
          %s241 = sshll.u32 [#allocation5], 4
          %s242 = int_to_ptr.vmem [resolvable:$true] %s241
          %247 = dma.hbm_to_vmem [thread:$0]  %s1, 14336, %s242, [#allocation6], 448, 448, 28
        $region16: #{tpu_custom_call.1} parent=11 // pred_fallthru
          _
        // Predicated region
        $region17: #{tpu_custom_call.1} parent=11 // pred_check
          %p248 = pneg %p89
        $region18: #{tpu_custom_call.1} parent=11 // pred_check_branch
          %250 = sbr.rel (%p248) target = $region20
        $region19: #{tpu_custom_call.1} parent=11 // pred_region
          _
        $region20: #{tpu_custom_call.1} parent=11 // pred_fallthru
          _
        // Predicated region
        $region21: #{tpu_custom_call.1} parent=11 // pred_check
          %p251 = pneg %p110
        $region22: #{tpu_custom_call.1} parent=11 // pred_check_branch
          %253 = sbr.rel (%p251) target = $region24
        $region23: #{tpu_custom_call.1} parent=11 // pred_region
          %s255 = ssub.s32 14336, 14336
          %256 = vsyncadd [#allocation6], %s255
          %s257 = sshll.u32 [#allocation7], 4
          %s258 = int_to_ptr.vmem [resolvable:$true] %s257
          %263 = dma.hbm_to_vmem [thread:$0]  %s3, 14336, %s258, [#allocation6], 128, 128, 8
        $region24: #{tpu_custom_call.1} parent=11 // pred_fallthru
          _
        // Predicated region
        $region25: #{tpu_custom_call.1} parent=11 // pred_check
          %p264 = pneg %p131
        $region26: #{tpu_custom_call.1} parent=11 // pred_check_branch
          %266 = sbr.rel (%p264) target = $region28
        $region27: #{tpu_custom_call.1} parent=11 // pred_region
          _
        $region28: #{tpu_custom_call.1} parent=11 // pred_fallthru
          _
        // Predicated region
        $region29: #{tpu_custom_call.1} parent=11 // pred_check
          %p267 = pneg %p152
        $region30: #{tpu_custom_call.1} parent=11 // pred_check_branch
          %269 = sbr.rel (%p267) target = $region32
        $region31: #{tpu_custom_call.1} parent=11 // pred_region
          _
        $region32: #{tpu_custom_call.1} parent=11 // pred_fallthru
          _
        // Predicated region
        $region33: #{tpu_custom_call.1} parent=11 // pred_check
          %p270 = pneg %p173
        $region34: #{tpu_custom_call.1} parent=11 // pred_check_branch
          %272 = sbr.rel (%p270) target = $region36
        $region35: #{tpu_custom_call.1} parent=11 // pred_region
          _
        $region36: #{tpu_custom_call.1} parent=11 // pred_fallthru
          _
        // Predicated region
        $region37: #{tpu_custom_call.1} parent=11 // pred_check
          %p273 = pneg %p194
        $region38: #{tpu_custom_call.1} parent=11 // pred_check_branch
          %275 = sbr.rel (%p273) target = $region40
        $region39: #{tpu_custom_call.1} parent=11 // pred_region
          _
        $region40: #{tpu_custom_call.1} parent=11 // pred_fallthru
          _
      $region12: #{tpu_custom_call.1} parent=5 // pred_fallthru
        _
      %p276 = scmp.lt.s32.totalorder %s21, 2
      // Predicated region
      $region41: #{tpu_custom_call.1} parent=5 // pred_check
        %p277 = pneg %p276
      $region42: #{tpu_custom_call.1} parent=5 // pred_check_branch
        %279 = sbr.rel (%p277) target = $region44
      $region43: #{tpu_custom_call.1} parent=5 // pred_region
        // Predicated region
        $region45: #{tpu_custom_call.1} parent=43 // pred_check
          %p280 = pneg %p41
        $region46: #{tpu_custom_call.1} parent=43 // pred_check_branch
          %282 = sbr.rel (%p280) target = $region48
        $region47: #{tpu_custom_call.1} parent=43 // pred_region
          %s283 = sand.u32 %s31, 1
          %s284 = scalar_lea.sflag [#allocation3], %s283
          %s285 = sand.u32 %s31, 1
          %s286 = smul.addr %s285, 16
          %s287 = scalar_lea.vmem [#allocation2], %s286
          %s289 = ssub.s32 256, 256
          %290 = vsyncadd %s284, %s289
          %s291 = smul.addr %s21, 2
          %s292 = smul.addr %s291, 128
          %s293 = scalar_lea.hbm %s0, %s292
          %s295 = sshll.u32 %s287, 4
          %s296 = int_to_ptr.vmem [resolvable:$true] %s295
          %298 = dma.hbm_to_vmem [thread:$0]  %s293, 256, %s296, %s284
        $region48: #{tpu_custom_call.1} parent=43 // pred_fallthru
          _
      $region44: #{tpu_custom_call.1} parent=5 // pred_fallthru
        _
      %p299 = scmp.le.s32.totalorder 1, %s21
      %p300 = scmp.lt.s32.totalorder %s21, 3
      %p301 = pnand %p299, %p300
      %p302 = pneg %p301
      // Predicated region
      $region49: #{tpu_custom_call.1} parent=5 // pred_check
        _
      $region50: #{tpu_custom_call.1} parent=5 // pred_check_branch
        %304 = sbr.rel (%p301) target = $region52
      $region51: #{tpu_custom_call.1} parent=5 // pred_region
        %s305 = ssub.s32 %s21, 1
        %s306 = sand.u32 %s34, 1
        %s307 = scalar_lea.sflag [#allocation3], %s306
        %s308 = sand.u32 %s34, 1
        %s309 = smul.addr %s308, 16
        %s310 = scalar_lea.vmem [#allocation2], %s309
        // Predicated region
        $region53: #{tpu_custom_call.1} parent=51 // pred_check
          %p311 = pneg %p47
        $region54: #{tpu_custom_call.1} parent=51 // pred_check_branch
          %313 = sbr.rel (%p311) target = $region56
        $region55: #{tpu_custom_call.1} parent=51 // pred_region
          %314 = dma.done %s307, 256
        $region56: #{tpu_custom_call.1} parent=51 // pred_fallthru
          _
        // Predicated region
        $region57: #{tpu_custom_call.1} parent=51 // pred_check
          %p315 = pneg %p68
        $region58: #{tpu_custom_call.1} parent=51 // pred_check_branch
          %317 = sbr.rel (%p315) target = $region60
        $region59: #{tpu_custom_call.1} parent=51 // pred_region
          %318 = dma.done [#allocation6], 14336
        $region60: #{tpu_custom_call.1} parent=51 // pred_fallthru
          _
        // Predicated region
        $region61: #{tpu_custom_call.1} parent=51 // pred_check
          %p319 = pneg %p110
        $region62: #{tpu_custom_call.1} parent=51 // pred_check_branch
          %321 = sbr.rel (%p319) target = $region64
        $region63: #{tpu_custom_call.1} parent=51 // pred_region
          %322 = dma.done [#allocation6], 14336
        $region64: #{tpu_custom_call.1} parent=51 // pred_fallthru
          _
        %s323 = sand.u32 %s34, 1
        %s324 = scalar_lea.sflag [#allocation3], %s323
        %s325 = sand.u32 %s34, 1
        %s326 = smul.addr %s325, 16
        %s327 = scalar_lea.vmem [#allocation2], %s326
        %p328 = pneg %p47
        %p329 = pneg %p44
        %p330 = pneg %p68
        %p331 = pneg %p65
        %p332 = pneg %p89
        %p333 = pneg %p86
        %p334 = pneg %p110
        %p335 = pneg %p107
        %p336 = pneg %p131
        %p337 = pneg %p128
        %p338 = pneg %p152
        %p339 = pneg %p149
        %p340 = pneg %p173
        %p341 = pneg %p170
        %p342 = pneg %p194
        %p343 = pneg %p191
        %p344 = pneg %p220
        %p345 = pneg %p217
        %s346 = sand.u32 %s207, 1
        %s347 = scalar_lea.sflag [#allocation4], %s346
        %s348 = sand.u32 %s207, 1
        %s349 = smul.addr %s348, 16
        %s350 = scalar_lea.vmem [#allocation8], %s349
        %v352 = vld [vmem:[%s310] sm:$0xff]
        %v353 = vld [vmem:[%s310 + $0x8] sm:$0xff]
        %v354 = vpack.c.bf16 %v352, %v352
        %v355 = vpack.c.bf16 %v353, %v353
        %v356 = vld [vmem:[#allocation5] sm:$0xff]
        %v357 = vld [vmem:[#allocation5 + $0x8] sm:$0xff]
        %v358 = vld [vmem:[#allocation5 + $0x10] sm:$0xff]
        %v359 = vld [vmem:[#allocation5 + $0x18] sm:$0xf]
        %v360 = vld [vmem:[#allocation5 + $0x1c] sm:$0xff]
        %v361 = vld [vmem:[#allocation5 + $0x24] sm:$0xff]
        %v362 = vld [vmem:[#allocation5 + $0x2c] sm:$0xff]
        %v363 = vld [vmem:[#allocation5 + $0x34] sm:$0xf]
        %v364 = vld [vmem:[#allocation5 + $0x38] sm:$0xff]
        %v365 = vld [vmem:[#allocation5 + $0x40] sm:$0xff]
        %v366 = vld [vmem:[#allocation5 + $0x48] sm:$0xff]
        %v367 = vld [vmem:[#allocation5 + $0x50] sm:$0xf]
        %v368 = vld [vmem:[#allocation5 + $0x54] sm:$0xff]
        %v369 = vld [vmem:[#allocation5 + $0x5c] sm:$0xff]
        %v370 = vld [vmem:[#allocation5 + $0x64] sm:$0xff]
        %v371 = vld [vmem:[#allocation5 + $0x6c] sm:$0xf]
        %v372 = vld [vmem:[#allocation5 + $0x70] sm:$0xff]
        %v373 = vld [vmem:[#allocation5 + $0x78] sm:$0xff]
        %v374 = vld [vmem:[#allocation5 + $0x80] sm:$0xff]
        %v375 = vld [vmem:[#allocation5 + $0x88] sm:$0xf]
        %v376 = vld [vmem:[#allocation5 + $0x8c] sm:$0xff]
        %v377 = vld [vmem:[#allocation5 + $0x94] sm:$0xff]
        %v378 = vld [vmem:[#allocation5 + $0x9c] sm:$0xff]
        %v379 = vld [vmem:[#allocation5 + $0xa4] sm:$0xf]
        %v380 = vld [vmem:[#allocation5 + $0xa8] sm:$0xff]
        %v381 = vld [vmem:[#allocation5 + $0xb0] sm:$0xff]
        %v382 = vld [vmem:[#allocation5 + $0xb8] sm:$0xff]
        %v383 = vld [vmem:[#allocation5 + $0xc0] sm:$0xf]
        %v384 = vld [vmem:[#allocation5 + $0xc4] sm:$0xff]
        %v385 = vld [vmem:[#allocation5 + $0xcc] sm:$0xff]
        %v386 = vld [vmem:[#allocation5 + $0xd4] sm:$0xff]
        %v387 = vld [vmem:[#allocation5 + $0xdc] sm:$0xf]
        %v388 = vld [vmem:[#allocation5 + $0xe0] sm:$0xff]
        %v389 = vld [vmem:[#allocation5 + $0xe8] sm:$0xff]
        %v390 = vld [vmem:[#allocation5 + $0xf0] sm:$0xff]
        %v391 = vld [vmem:[#allocation5 + $0xf8] sm:$0xf]
        %v392 = vld [vmem:[#allocation5 + $0xfc] sm:$0xff]
        %v393 = vld [vmem:[#allocation5 + $0x104] sm:$0xff]
        %v394 = vld [vmem:[#allocation5 + $0x10c] sm:$0xff]
        %v395 = vld [vmem:[#allocation5 + $0x114] sm:$0xf]
        %v396 = vld [vmem:[#allocation5 + $0x118] sm:$0xff]
        %v397 = vld [vmem:[#allocation5 + $0x120] sm:$0xff]
        %v398 = vld [vmem:[#allocation5 + $0x128] sm:$0xff]
        %v399 = vld [vmem:[#allocation5 + $0x130] sm:$0xf]
        %v400 = vld [vmem:[#allocation5 + $0x134] sm:$0xff]
        %v401 = vld [vmem:[#allocation5 + $0x13c] sm:$0xff]
        %v402 = vld [vmem:[#allocation5 + $0x144] sm:$0xff]
        %v403 = vld [vmem:[#allocation5 + $0x14c] sm:$0xf]
        %v404 = vld [vmem:[#allocation5 + $0x150] sm:$0xff]
        %v405 = vld [vmem:[#allocation5 + $0x158] sm:$0xff]
        %v406 = vld [vmem:[#allocation5 + $0x160] sm:$0xff]
        %v407 = vld [vmem:[#allocation5 + $0x168] sm:$0xf]
        %v408 = vld [vmem:[#allocation5 + $0x16c] sm:$0xff]
        %v409 = vld [vmem:[#allocation5 + $0x174] sm:$0xff]
        %v410 = vld [vmem:[#allocation5 + $0x17c] sm:$0xff]
        %v411 = vld [vmem:[#allocation5 + $0x184] sm:$0xf]
        %v412 = vld [vmem:[#allocation5 + $0x188] sm:$0xff]
        %v413 = vld [vmem:[#allocation5 + $0x190] sm:$0xff]
        %v414 = vld [vmem:[#allocation5 + $0x198] sm:$0xff]
        %v415 = vld [vmem:[#allocation5 + $0x1a0] sm:$0xf]
        %v416 = vld [vmem:[#allocation5 + $0x1a4] sm:$0xff]
        %v417 = vld [vmem:[#allocation5 + $0x1ac] sm:$0xff]
        %v418 = vld [vmem:[#allocation5 + $0x1b4] sm:$0xff]
        %v419 = vld [vmem:[#allocation5 + $0x1bc] sm:$0xf]
        %v420 = vld [vmem:[#allocation5 + $0x1c0] sm:$0xff]
        %v421 = vld [vmem:[#allocation5 + $0x1c8] sm:$0xff]
        %v422 = vld [vmem:[#allocation5 + $0x1d0] sm:$0xff]
        %v423 = vld [vmem:[#allocation5 + $0x1d8] sm:$0xf]
        %v424 = vld [vmem:[#allocation5 + $0x1dc] sm:$0xff]
        %v425 = vld [vmem:[#allocation5 + $0x1e4] sm:$0xff]
        %v426 = vld [vmem:[#allocation5 + $0x1ec] sm:$0xff]
        %v427 = vld [vmem:[#allocation5 + $0x1f4] sm:$0xf]
        %v428 = vld [vmem:[#allocation5 + $0x1f8] sm:$0xff]
        %v429 = vld [vmem:[#allocation5 + $0x200] sm:$0xff]
        %v430 = vld [vmem:[#allocation5 + $0x208] sm:$0xff]
        %v431 = vld [vmem:[#allocation5 + $0x210] sm:$0xf]
        %v432 = vld [vmem:[#allocation5 + $0x214] sm:$0xff]
        %v433 = vld [vmem:[#allocation5 + $0x21c] sm:$0xff]
        %v434 = vld [vmem:[#allocation5 + $0x224] sm:$0xff]
        %v435 = vld [vmem:[#allocation5 + $0x22c] sm:$0xf]
        %v436 = vld [vmem:[#allocation5 + $0x230] sm:$0xff]
        %v437 = vld [vmem:[#allocation5 + $0x238] sm:$0xff]
        %v438 = vld [vmem:[#allocation5 + $0x240] sm:$0xff]
        %v439 = vld [vmem:[#allocation5 + $0x248] sm:$0xf]
        %v440 = vld [vmem:[#allocation5 + $0x24c] sm:$0xff]
        %v441 = vld [vmem:[#allocation5 + $0x254] sm:$0xff]
        %v442 = vld [vmem:[#allocation5 + $0x25c] sm:$0xff]
        %v443 = vld [vmem:[#allocation5 + $0x264] sm:$0xf]
        %v444 = vld [vmem:[#allocation5 + $0x268] sm:$0xff]
        %v445 = vld [vmem:[#allocation5 + $0x270] sm:$0xff]
        %v446 = vld [vmem:[#allocation5 + $0x278] sm:$0xff]
        %v447 = vld [vmem:[#allocation5 + $0x280] sm:$0xf]
        %v448 = vld [vmem:[#allocation5 + $0x284] sm:$0xff]
        %v449 = vld [vmem:[#allocation5 + $0x28c] sm:$0xff]
        %v450 = vld [vmem:[#allocation5 + $0x294] sm:$0xff]
        %v451 = vld [vmem:[#allocation5 + $0x29c] sm:$0xf]
        %v452 = vld [vmem:[#allocation5 + $0x2a0] sm:$0xff]
        %v453 = vld [vmem:[#allocation5 + $0x2a8] sm:$0xff]
        %v454 = vld [vmem:[#allocation5 + $0x2b0] sm:$0xff]
        %v455 = vld [vmem:[#allocation5 + $0x2b8] sm:$0xf]
        %v456 = vld [vmem:[#allocation5 + $0x2bc] sm:$0xff]
        %v457 = vld [vmem:[#allocation5 + $0x2c4] sm:$0xff]
        %v458 = vld [vmem:[#allocation5 + $0x2cc] sm:$0xff]
        %v459 = vld [vmem:[#allocation5 + $0x2d4] sm:$0xf]
        %v460 = vld [vmem:[#allocation5 + $0x2d8] sm:$0xff]
        %v461 = vld [vmem:[#allocation5 + $0x2e0] sm:$0xff]
        %v462 = vld [vmem:[#allocation5 + $0x2e8] sm:$0xff]
        %v463 = vld [vmem:[#allocation5 + $0x2f0] sm:$0xf]
        %v464 = vld [vmem:[#allocation5 + $0x2f4] sm:$0xff]
        %v465 = vld [vmem:[#allocation5 + $0x2fc] sm:$0xff]
        %v466 = vld [vmem:[#allocation5 + $0x304] sm:$0xff]
        %v467 = vld [vmem:[#allocation5 + $0x30c] sm:$0xf]
        %v468 = vld [vmem:[#allocation5 + $0x310] sm:$0xff]
        %v469 = vld [vmem:[#allocation5 + $0x318] sm:$0xff]
        %v470 = vld [vmem:[#allocation5 + $0x320] sm:$0xff]
        %v471 = vld [vmem:[#allocation5 + $0x328] sm:$0xf]
        %v472 = vld [vmem:[#allocation5 + $0x32c] sm:$0xff]
        %v473 = vld [vmem:[#allocation5 + $0x334] sm:$0xff]
        %v474 = vld [vmem:[#allocation5 + $0x33c] sm:$0xff]
        %v475 = vld [vmem:[#allocation5 + $0x344] sm:$0xf]
        %v476 = vld [vmem:[#allocation5 + $0x348] sm:$0xff]
        %v477 = vld [vmem:[#allocation5 + $0x350] sm:$0xff]
        %v478 = vld [vmem:[#allocation5 + $0x358] sm:$0xff]
        %v479 = vld [vmem:[#allocation5 + $0x360] sm:$0xf]
        %v480 = vld [vmem:[#allocation5 + $0x364] sm:$0xff]
        %v481 = vld [vmem:[#allocation5 + $0x36c] sm:$0xff]
        %v482 = vld [vmem:[#allocation5 + $0x374] sm:$0xff]
        %v483 = vld [vmem:[#allocation5 + $0x37c] sm:$0xf]
        %v484 = vld [vmem:[%s2] sm:$0xff]
        %v486 = vlaneseq
        %v487 = vshrl.u32 %v486, 7
        %v488 = vsub.s32 0, %v487
        %v489 = vrot.slane %v484, %v488
        %v490 = vlaneseq
        %v491 = vshrl.u32 %v490, 7
        %v492 = vsub.s32 1, %v491
        %v493 = vrot.slane %v484, %v492
        %v494 = vlaneseq
        %v495 = vshrl.u32 %v494, 7
        %v496 = vsub.s32 2, %v495
        %v497 = vrot.slane %v484, %v496
        %v498 = vlaneseq
        %v499 = vshrl.u32 %v498, 7
        %v500 = vsub.s32 3, %v499
        %v501 = vrot.slane %v484, %v500
        %v502 = vlaneseq
        %v503 = vshrl.u32 %v502, 7
        %v504 = vsub.s32 4, %v503
        %v505 = vrot.slane %v484, %v504
        %v506 = vlaneseq
        %v507 = vshrl.u32 %v506, 7
        %v508 = vsub.s32 5, %v507
        %v509 = vrot.slane %v484, %v508
        %v510 = vlaneseq
        %v511 = vshrl.u32 %v510, 7
        %v512 = vsub.s32 6, %v511
        %v513 = vrot.slane %v484, %v512
        %v649 = vunpack.c.l.b16 %v356
        %v650 = vunpack.c.h.b16 %v356
        %v651 = vunpack.c.l.b16 %v357
        %v652 = vunpack.c.h.b16 %v357
        %v653 = vunpack.c.l.b16 %v358
        %v654 = vunpack.c.h.b16 %v358
        %v655 = vunpack.c.l.b16 %v359
        %v656 = vunpack.c.l.b16 %v360
        %v657 = vunpack.c.h.b16 %v360
        %v658 = vunpack.c.l.b16 %v361
        %v659 = vunpack.c.h.b16 %v361
        %v660 = vunpack.c.l.b16 %v362
        %v661 = vunpack.c.h.b16 %v362
        %v662 = vunpack.c.l.b16 %v363
        %v663 = vunpack.c.l.b16 %v364
        %v664 = vunpack.c.h.b16 %v364
        %v665 = vunpack.c.l.b16 %v365
        %v666 = vunpack.c.h.b16 %v365
        %v667 = vunpack.c.l.b16 %v366
        %v668 = vunpack.c.h.b16 %v366
        %v669 = vunpack.c.l.b16 %v367
        %v670 = vunpack.c.l.b16 %v368
        %v671 = vunpack.c.h.b16 %v368
        %v672 = vunpack.c.l.b16 %v369
        %v673 = vunpack.c.h.b16 %v369
        %v674 = vunpack.c.l.b16 %v370
        %v675 = vunpack.c.h.b16 %v370
        %v676 = vunpack.c.l.b16 %v371
        %v677 = vunpack.c.l.b16 %v372
        %v678 = vunpack.c.h.b16 %v372
        %v679 = vunpack.c.l.b16 %v373
        %v680 = vunpack.c.h.b16 %v373
        %v681 = vunpack.c.l.b16 %v374
        %v682 = vunpack.c.h.b16 %v374
        %v683 = vunpack.c.l.b16 %v375
        %v684 = vunpack.c.l.b16 %v376
        %v685 = vunpack.c.h.b16 %v376
        %v686 = vunpack.c.l.b16 %v377
        %v687 = vunpack.c.h.b16 %v377
        %v688 = vunpack.c.l.b16 %v378
        %v689 = vunpack.c.h.b16 %v378
        %v690 = vunpack.c.l.b16 %v379
        %v691 = vunpack.c.l.b16 %v380
        %v692 = vunpack.c.h.b16 %v380
        %v693 = vunpack.c.l.b16 %v381
        %v694 = vunpack.c.h.b16 %v381
        %v695 = vunpack.c.l.b16 %v382
        %v696 = vunpack.c.h.b16 %v382
        %v697 = vunpack.c.l.b16 %v383
        %v698 = vunpack.c.l.b16 %v384
        %v699 = vunpack.c.h.b16 %v384
        %v700 = vunpack.c.l.b16 %v385
        %v701 = vunpack.c.h.b16 %v385
        %v702 = vunpack.c.l.b16 %v386
        %v703 = vunpack.c.h.b16 %v386
        %v704 = vunpack.c.l.b16 %v387
        %v705 = vunpack.c.l.b16 %v388
        %v706 = vunpack.c.h.b16 %v388
        %v707 = vunpack.c.l.b16 %v389
        %v708 = vunpack.c.h.b16 %v389
        %v709 = vunpack.c.l.b16 %v390
        %v710 = vunpack.c.h.b16 %v390
        %v711 = vunpack.c.l.b16 %v391
        %v712 = vunpack.c.l.b16 %v392
        %v713 = vunpack.c.h.b16 %v392
        %v714 = vunpack.c.l.b16 %v393
        %v715 = vunpack.c.h.b16 %v393
        %v716 = vunpack.c.l.b16 %v394
        %v717 = vunpack.c.h.b16 %v394
        %v718 = vunpack.c.l.b16 %v395
        %v719 = vunpack.c.l.b16 %v396
        %v720 = vunpack.c.h.b16 %v396
        %v721 = vunpack.c.l.b16 %v397
        %v722 = vunpack.c.h.b16 %v397
        %v723 = vunpack.c.l.b16 %v398
        %v724 = vunpack.c.h.b16 %v398
        %v725 = vunpack.c.l.b16 %v399
        %v726 = vunpack.c.l.b16 %v400
        %v727 = vunpack.c.h.b16 %v400
        %v728 = vunpack.c.l.b16 %v401
        %v729 = vunpack.c.h.b16 %v401
        %v730 = vunpack.c.l.b16 %v402
        %v731 = vunpack.c.h.b16 %v402
        %v732 = vunpack.c.l.b16 %v403
        %v733 = vunpack.c.l.b16 %v404
        %v734 = vunpack.c.h.b16 %v404
        %v735 = vunpack.c.l.b16 %v405
        %v736 = vunpack.c.h.b16 %v405
        %v737 = vunpack.c.l.b16 %v406
        %v738 = vunpack.c.h.b16 %v406
        %v739 = vunpack.c.l.b16 %v407
        %v740 = vunpack.c.l.b16 %v408
        %v741 = vunpack.c.h.b16 %v408
        %v742 = vunpack.c.l.b16 %v409
        %v743 = vunpack.c.h.b16 %v409
        %v744 = vunpack.c.l.b16 %v410
        %v745 = vunpack.c.h.b16 %v410
        %v746 = vunpack.c.l.b16 %v411
        %v747 = vunpack.c.l.b16 %v412
        %v748 = vunpack.c.h.b16 %v412
        %v749 = vunpack.c.l.b16 %v413
        %v750 = vunpack.c.h.b16 %v413
        %v751 = vunpack.c.l.b16 %v414
        %v752 = vunpack.c.h.b16 %v414
        %v753 = vunpack.c.l.b16 %v415
        %v754 = vunpack.c.l.b16 %v416
        %v755 = vunpack.c.h.b16 %v416
        %v756 = vunpack.c.l.b16 %v417
        %v757 = vunpack.c.h.b16 %v417
        %v758 = vunpack.c.l.b16 %v418
        %v759 = vunpack.c.h.b16 %v418
        %v760 = vunpack.c.l.b16 %v419
        %v761 = vunpack.c.l.b16 %v420
        %v762 = vunpack.c.h.b16 %v420
        %v763 = vunpack.c.l.b16 %v421
        %v764 = vunpack.c.h.b16 %v421
        %v765 = vunpack.c.l.b16 %v422
        %v766 = vunpack.c.h.b16 %v422
        %v767 = vunpack.c.l.b16 %v423
        %v768 = vunpack.c.l.b16 %v424
        %v769 = vunpack.c.h.b16 %v424
        %v770 = vunpack.c.l.b16 %v425
        %v771 = vunpack.c.h.b16 %v425
        %v772 = vunpack.c.l.b16 %v426
        %v773 = vunpack.c.h.b16 %v426
        %v774 = vunpack.c.l.b16 %v427
        %v775 = vunpack.c.l.b16 %v428
        %v776 = vunpack.c.h.b16 %v428
        %v777 = vunpack.c.l.b16 %v429
        %v778 = vunpack.c.h.b16 %v429
        %v779 = vunpack.c.l.b16 %v430
        %v780 = vunpack.c.h.b16 %v430
        %v781 = vunpack.c.l.b16 %v431
        %v782 = vunpack.c.l.b16 %v432
        %v783 = vunpack.c.h.b16 %v432
        %v784 = vunpack.c.l.b16 %v433
        %v785 = vunpack.c.h.b16 %v433
        %v786 = vunpack.c.l.b16 %v434
        %v787 = vunpack.c.h.b16 %v434
        %v788 = vunpack.c.l.b16 %v435
        %v789 = vunpack.c.l.b16 %v436
        %v790 = vunpack.c.h.b16 %v436
        %v791 = vunpack.c.l.b16 %v437
        %v792 = vunpack.c.h.b16 %v437
        %v793 = vunpack.c.l.b16 %v438
        %v794 = vunpack.c.h.b16 %v438
        %v795 = vunpack.c.l.b16 %v439
        %v796 = vunpack.c.l.b16 %v440
        %v797 = vunpack.c.h.b16 %v440
        %v798 = vunpack.c.l.b16 %v441
        %v799 = vunpack.c.h.b16 %v441
        %v800 = vunpack.c.l.b16 %v442
        %v801 = vunpack.c.h.b16 %v442
        %v802 = vunpack.c.l.b16 %v443
        %v803 = vunpack.c.l.b16 %v444
        %v804 = vunpack.c.h.b16 %v444
        %v805 = vunpack.c.l.b16 %v445
        %v806 = vunpack.c.h.b16 %v445
        %v807 = vunpack.c.l.b16 %v446
        %v808 = vunpack.c.h.b16 %v446
        %v809 = vunpack.c.l.b16 %v447
        %v810 = vunpack.c.l.b16 %v448
        %v811 = vunpack.c.h.b16 %v448
        %v812 = vunpack.c.l.b16 %v449
        %v813 = vunpack.c.h.b16 %v449
        %v814 = vunpack.c.l.b16 %v450
        %v815 = vunpack.c.h.b16 %v450
        %v816 = vunpack.c.l.b16 %v451
        %v817 = vunpack.c.l.b16 %v452
        %v818 = vunpack.c.h.b16 %v452
        %v819 = vunpack.c.l.b16 %v453
        %v820 = vunpack.c.h.b16 %v453
        %v821 = vunpack.c.l.b16 %v454
        %v822 = vunpack.c.h.b16 %v454
        %v823 = vunpack.c.l.b16 %v455
        %v824 = vunpack.c.l.b16 %v456
        %v825 = vunpack.c.h.b16 %v456
        %v826 = vunpack.c.l.b16 %v457
        %v827 = vunpack.c.h.b16 %v457
        %v828 = vunpack.c.l.b16 %v458
        %v829 = vunpack.c.h.b16 %v458
        %v830 = vunpack.c.l.b16 %v459
        %v831 = vunpack.c.l.b16 %v460
        %v832 = vunpack.c.h.b16 %v460
        %v833 = vunpack.c.l.b16 %v461
        %v834 = vunpack.c.h.b16 %v461
        %v835 = vunpack.c.l.b16 %v462
        %v836 = vunpack.c.h.b16 %v462
        %v837 = vunpack.c.l.b16 %v463
        %v838 = vunpack.c.l.b16 %v464
        %v839 = vunpack.c.h.b16 %v464
        %v840 = vunpack.c.l.b16 %v465
        %v841 = vunpack.c.h.b16 %v465
        %v842 = vunpack.c.l.b16 %v466
        %v843 = vunpack.c.h.b16 %v466
        %v844 = vunpack.c.l.b16 %v467
        %v845 = vunpack.c.l.b16 %v468
        %v846 = vunpack.c.h.b16 %v468
        %v847 = vunpack.c.l.b16 %v469
        %v848 = vunpack.c.h.b16 %v469
        %v849 = vunpack.c.l.b16 %v470
        %v850 = vunpack.c.h.b16 %v470
        %v851 = vunpack.c.l.b16 %v471
        %v852 = vunpack.c.l.b16 %v472
        %v853 = vunpack.c.h.b16 %v472
        %v854 = vunpack.c.l.b16 %v473
        %v855 = vunpack.c.h.b16 %v473
        %v856 = vunpack.c.l.b16 %v474
        %v857 = vunpack.c.h.b16 %v474
        %v858 = vunpack.c.l.b16 %v475
        %v859 = vunpack.c.l.b16 %v476
        %v860 = vunpack.c.h.b16 %v476
        %v861 = vunpack.c.l.b16 %v477
        %v862 = vunpack.c.h.b16 %v477
        %v863 = vunpack.c.l.b16 %v478
        %v864 = vunpack.c.h.b16 %v478
        %v865 = vunpack.c.l.b16 %v479
        %v866 = vunpack.c.l.b16 %v480
        %v867 = vunpack.c.h.b16 %v480
        %v868 = vunpack.c.l.b16 %v481
        %v869 = vunpack.c.h.b16 %v481
        %v870 = vunpack.c.l.b16 %v482
        %v871 = vunpack.c.h.b16 %v482
        %v872 = vunpack.c.l.b16 %v483
        %v873 = vpack.c.b16 %v656, %v649
        %v874 = vpack.c.b16 %v657, %v650
        %v875 = vpack.c.b16 %v658, %v651
        %v876 = vpack.c.b16 %v659, %v652
        %v877 = vpack.c.b16 %v660, %v653
        %v878 = vpack.c.b16 %v661, %v654
        %v879 = vpack.c.b16 %v662, %v655
        %v880 = vpack.c.b16 %v670, %v663
        %v881 = vpack.c.b16 %v671, %v664
        %v882 = vpack.c.b16 %v672, %v665
        %v883 = vpack.c.b16 %v673, %v666
        %v884 = vpack.c.b16 %v674, %v667
        %v885 = vpack.c.b16 %v675, %v668
        %v886 = vpack.c.b16 %v676, %v669
        %v887 = vpack.c.b16 %v684, %v677
        %v888 = vpack.c.b16 %v685, %v678
        %v889 = vpack.c.b16 %v686, %v679
        %v890 = vpack.c.b16 %v687, %v680
        %v891 = vpack.c.b16 %v688, %v681
        %v892 = vpack.c.b16 %v689, %v682
        %v893 = vpack.c.b16 %v690, %v683
        %v894 = vpack.c.b16 %v698, %v691
        %v895 = vpack.c.b16 %v699, %v692
        %v896 = vpack.c.b16 %v700, %v693
        %v897 = vpack.c.b16 %v701, %v694
        %v898 = vpack.c.b16 %v702, %v695
        %v899 = vpack.c.b16 %v703, %v696
        %v900 = vpack.c.b16 %v704, %v697
        %v901 = vpack.c.b16 %v712, %v705
        %v902 = vpack.c.b16 %v713, %v706
        %v903 = vpack.c.b16 %v714, %v707
        %v904 = vpack.c.b16 %v715, %v708
        %v905 = vpack.c.b16 %v716, %v709
        %v906 = vpack.c.b16 %v717, %v710
        %v907 = vpack.c.b16 %v718, %v711
        %v908 = vpack.c.b16 %v726, %v719
        %v909 = vpack.c.b16 %v727, %v720
        %v910 = vpack.c.b16 %v728, %v721
        %v911 = vpack.c.b16 %v729, %v722
        %v912 = vpack.c.b16 %v730, %v723
        %v913 = vpack.c.b16 %v731, %v724
        %v914 = vpack.c.b16 %v732, %v725
        %v915 = vpack.c.b16 %v740, %v733
        %v916 = vpack.c.b16 %v741, %v734
        %v917 = vpack.c.b16 %v742, %v735
        %v918 = vpack.c.b16 %v743, %v736
        %v919 = vpack.c.b16 %v744, %v737
        %v920 = vpack.c.b16 %v745, %v738
        %v921 = vpack.c.b16 %v746, %v739
        %v922 = vpack.c.b16 %v754, %v747
        %v923 = vpack.c.b16 %v755, %v748
        %v924 = vpack.c.b16 %v756, %v749
        %v925 = vpack.c.b16 %v757, %v750
        %v926 = vpack.c.b16 %v758, %v751
        %v927 = vpack.c.b16 %v759, %v752
        %v928 = vpack.c.b16 %v760, %v753
        %v929 = vpack.c.b16 %v768, %v761
        %v930 = vpack.c.b16 %v769, %v762
        %v931 = vpack.c.b16 %v770, %v763
        %v932 = vpack.c.b16 %v771, %v764
        %v933 = vpack.c.b16 %v772, %v765
        %v934 = vpack.c.b16 %v773, %v766
        %v935 = vpack.c.b16 %v774, %v767
        %v936 = vpack.c.b16 %v782, %v775
        %v937 = vpack.c.b16 %v783, %v776
        %v938 = vpack.c.b16 %v784, %v777
        %v939 = vpack.c.b16 %v785, %v778
        %v940 = vpack.c.b16 %v786, %v779
        %v941 = vpack.c.b16 %v787, %v780
        %v942 = vpack.c.b16 %v788, %v781
        %v943 = vpack.c.b16 %v796, %v789
        %v944 = vpack.c.b16 %v797, %v790
        %v945 = vpack.c.b16 %v798, %v791
        %v946 = vpack.c.b16 %v799, %v792
        %v947 = vpack.c.b16 %v800, %v793
        %v948 = vpack.c.b16 %v801, %v794
        %v949 = vpack.c.b16 %v802, %v795
        %v950 = vpack.c.b16 %v810, %v803
        %v951 = vpack.c.b16 %v811, %v804
        %v952 = vpack.c.b16 %v812, %v805
        %v953 = vpack.c.b16 %v813, %v806
        %v954 = vpack.c.b16 %v814, %v807
        %v955 = vpack.c.b16 %v815, %v808
        %v956 = vpack.c.b16 %v816, %v809
        %v957 = vpack.c.b16 %v824, %v817
        %v958 = vpack.c.b16 %v825, %v818
        %v959 = vpack.c.b16 %v826, %v819
        %v960 = vpack.c.b16 %v827, %v820
        %v961 = vpack.c.b16 %v828, %v821
        %v962 = vpack.c.b16 %v829, %v822
        %v963 = vpack.c.b16 %v830, %v823
        %v964 = vpack.c.b16 %v838, %v831
        %v965 = vpack.c.b16 %v839, %v832
        %v966 = vpack.c.b16 %v840, %v833
        %v967 = vpack.c.b16 %v841, %v834
        %v968 = vpack.c.b16 %v842, %v835
        %v969 = vpack.c.b16 %v843, %v836
        %v970 = vpack.c.b16 %v844, %v837
        %v971 = vpack.c.b16 %v852, %v845
        %v972 = vpack.c.b16 %v853, %v846
        %v973 = vpack.c.b16 %v854, %v847
        %v974 = vpack.c.b16 %v855, %v848
        %v975 = vpack.c.b16 %v856, %v849
        %v976 = vpack.c.b16 %v857, %v850
        %v977 = vpack.c.b16 %v858, %v851
        %v978 = vpack.c.b16 %v866, %v859
        %v979 = vpack.c.b16 %v867, %v860
        %v980 = vpack.c.b16 %v868, %v861
        %v981 = vpack.c.b16 %v869, %v862
        %v982 = vpack.c.b16 %v870, %v863
        %v983 = vpack.c.b16 %v871, %v864
        %v984 = vpack.c.b16 %v872, %v865
        %1097 = vmatprep.subr.bf16.mxu0 %v874
        %1098 = vmatpush1.bf16.msra.mxu0 %v873
        %1099 = vmatprep.subr.bf16.mxu0 %v881
        %1100 = vmatpush1.bf16.msra.mxu0 %v880
        %1101 = vmatprep.subr.bf16.mxu0 %v888
        %1102 = vmatpush1.bf16.msra.mxu0 %v887
        %1103 = vmatprep.subr.bf16.mxu0 %v895
        %1104 = vmatpush1.bf16.msra.mxu0 %v894
        %1105 = vmatprep.subr.bf16.mxu0 %v902
        %1106 = vmatpush1.bf16.msra.mxu0 %v901
        %1107 = vmatprep.subr.bf16.mxu0 %v909
        %1108 = vmatpush1.bf16.msra.mxu0 %v908
        %1109 = vmatprep.subr.bf16.mxu0 %v916
        %1110 = vmatpush1.bf16.msra.mxu0 %v915
        %1111 = vmatprep.subr.bf16.mxu0 %v923
        %1112 = vmatpush1.bf16.msra.mxu0 %v922
        %1113 = vmatprep.subr.bf16.mxu0 %v930
        %1114 = vmatpush1.bf16.msra.mxu0 %v929
        %1115 = vmatprep.subr.bf16.mxu0 %v937
        %1116 = vmatpush1.bf16.msra.mxu0 %v936
        %1117 = vmatprep.subr.bf16.mxu0 %v944
        %1118 = vmatpush1.bf16.msra.mxu0 %v943
        %1119 = vmatprep.subr.bf16.mxu0 %v951
        %1120 = vmatpush1.bf16.msra.mxu0 %v950
        %1121 = vmatprep.subr.bf16.mxu0 %v958
        %1122 = vmatpush1.bf16.msra.mxu0 %v957
        %1123 = vmatprep.subr.bf16.mxu0 %v965
        %1124 = vmatpush1.bf16.msra.mxu0 %v964
        %1125 = vmatprep.subr.bf16.mxu0 %v972
        %1126 = vmatpush1.bf16.msra.mxu0 %v971
        %1127 = vmatprep.subr.bf16.mxu0 %v979
        %1128 = vmatpush1.bf16.msra.mxu0 %v978
        %1129 = vmatprep.mubr.bf16.mxu0 %v355
        %1130 = vmatmul.mubr.bf16.gmra.mrb[0].mxu0 %v354
        %v1131 = vpop.f32.mrb[0].mxu0
        %v1132 = vadd.f32 %v489, %v1131
        %v1133 = vpop.f32.mrb[0].mxu0
        %v1134 = vadd.f32 %v493, %v1133
        %v1135 = vpop.f32.mrb[0].mxu0
        %v1136 = vpop.f32.mrb[0].mxu0
        %1137 = vdwg.mxu0
        %1138 = vmatprep.subr.bf16.mxu0 %v876
        %1139 = vmatpush1.bf16.msra.mxu0 %v875
        %1140 = vmatprep.subr.bf16.mxu0 %v883
        %1141 = vmatpush1.bf16.msra.mxu0 %v882
        %1142 = vmatprep.subr.bf16.mxu0 %v890
        %1143 = vmatpush1.bf16.msra.mxu0 %v889
        %1144 = vmatprep.subr.bf16.mxu0 %v897
        %1145 = vmatpush1.bf16.msra.mxu0 %v896
        %1146 = vmatprep.subr.bf16.mxu0 %v904
        %1147 = vmatpush1.bf16.msra.mxu0 %v903
        %1148 = vmatprep.subr.bf16.mxu0 %v911
        %1149 = vmatpush1.bf16.msra.mxu0 %v910
        %1150 = vmatprep.subr.bf16.mxu0 %v918
        %1151 = vmatpush1.bf16.msra.mxu0 %v917
        %1152 = vmatprep.subr.bf16.mxu0 %v925
        %1153 = vmatpush1.bf16.msra.mxu0 %v924
        %1154 = vmatprep.subr.bf16.mxu0 %v932
        %1155 = vmatpush1.bf16.msra.mxu0 %v931
        %1156 = vmatprep.subr.bf16.mxu0 %v939
        %1157 = vmatpush1.bf16.msra.mxu0 %v938
        %1158 = vmatprep.subr.bf16.mxu0 %v946
        %1159 = vmatpush1.bf16.msra.mxu0 %v945
        %1160 = vmatprep.subr.bf16.mxu0 %v953
        %1161 = vmatpush1.bf16.msra.mxu0 %v952
        %1162 = vmatprep.subr.bf16.mxu0 %v960
        %1163 = vmatpush1.bf16.msra.mxu0 %v959
        %1164 = vmatprep.subr.bf16.mxu0 %v967
        %1165 = vmatpush1.bf16.msra.mxu0 %v966
        %1166 = vmatprep.subr.bf16.mxu0 %v974
        %1167 = vmatpush1.bf16.msra.mxu0 %v973
        %1168 = vmatprep.subr.bf16.mxu0 %v981
        %1169 = vmatpush1.bf16.msra.mxu0 %v980
        %1170 = vmatprep.mubr.bf16.mxu0 %v355
        %1171 = vmatmul.mubr.bf16.gmra.mrb[0].mxu0 %v354
        %v1172 = vpop.f32.mrb[0].mxu0
        %v1173 = vadd.f32 %v497, %v1172
        %v1174 = vpop.f32.mrb[0].mxu0
        %v1175 = vadd.f32 %v501, %v1174
        %v1176 = vpop.f32.mrb[0].mxu0
        %v1177 = vpop.f32.mrb[0].mxu0
        %1178 = vdwg.mxu0
        %1179 = vmatprep.subr.bf16.mxu0 %v878
        %1180 = vmatpush1.bf16.msra.mxu0 %v877
        %1181 = vmatprep.subr.bf16.mxu0 %v885
        %1182 = vmatpush1.bf16.msra.mxu0 %v884
        %1183 = vmatprep.subr.bf16.mxu0 %v892
        %1184 = vmatpush1.bf16.msra.mxu0 %v891
        %1185 = vmatprep.subr.bf16.mxu0 %v899
        %1186 = vmatpush1.bf16.msra.mxu0 %v898
        %1187 = vmatprep.subr.bf16.mxu0 %v906
        %1188 = vmatpush1.bf16.msra.mxu0 %v905
        %1189 = vmatprep.subr.bf16.mxu0 %v913
        %1190 = vmatpush1.bf16.msra.mxu0 %v912
        %1191 = vmatprep.subr.bf16.mxu0 %v920
        %1192 = vmatpush1.bf16.msra.mxu0 %v919
        %1193 = vmatprep.subr.bf16.mxu0 %v927
        %1194 = vmatpush1.bf16.msra.mxu0 %v926
        %1195 = vmatprep.subr.bf16.mxu0 %v934
        %1196 = vmatpush1.bf16.msra.mxu0 %v933
        %1197 = vmatprep.subr.bf16.mxu0 %v941
        %1198 = vmatpush1.bf16.msra.mxu0 %v940
        %1199 = vmatprep.subr.bf16.mxu0 %v948
        %1200 = vmatpush1.bf16.msra.mxu0 %v947
        %1201 = vmatprep.subr.bf16.mxu0 %v955
        %1202 = vmatpush1.bf16.msra.mxu0 %v954
        %1203 = vmatprep.subr.bf16.mxu0 %v962
        %1204 = vmatpush1.bf16.msra.mxu0 %v961
        %1205 = vmatprep.subr.bf16.mxu0 %v969
        %1206 = vmatpush1.bf16.msra.mxu0 %v968
        %1207 = vmatprep.subr.bf16.mxu0 %v976
        %1208 = vmatpush1.bf16.msra.mxu0 %v975
        %1209 = vmatprep.subr.bf16.mxu0 %v983
        %1210 = vmatpush1.bf16.msra.mxu0 %v982
        %1211 = vmatprep.mubr.bf16.mxu0 %v355
        %1212 = vmatmul.mubr.bf16.gmra.mrb[0].mxu0 %v354
        %v1213 = vpop.f32.mrb[0].mxu0
        %v1214 = vadd.f32 %v505, %v1213
        %v1215 = vpop.f32.mrb[0].mxu0
        %v1216 = vadd.f32 %v509, %v1215
        %v1217 = vpop.f32.mrb[0].mxu0
        %v1218 = vpop.f32.mrb[0].mxu0
        %1219 = vdwg.mxu0
        %1220 = vmatprep.subr.bf16.mxu0 0
        %1221 = vmatpush1.bf16.msra.mxu0 %v879
        %1222 = vmatprep.subr.bf16.mxu0 0
        %1223 = vmatpush1.bf16.msra.mxu0 %v886
        %1224 = vmatprep.subr.bf16.mxu0 0
        %1225 = vmatpush1.bf16.msra.mxu0 %v893
        %1226 = vmatprep.subr.bf16.mxu0 0
        %1227 = vmatpush1.bf16.msra.mxu0 %v900
        %1228 = vmatprep.subr.bf16.mxu0 0
        %1229 = vmatpush1.bf16.msra.mxu0 %v907
        %1230 = vmatprep.subr.bf16.mxu0 0
        %1231 = vmatpush1.bf16.msra.mxu0 %v914
        %1232 = vmatprep.subr.bf16.mxu0 0
        %1233 = vmatpush1.bf16.msra.mxu0 %v921
        %1234 = vmatprep.subr.bf16.mxu0 0
        %1235 = vmatpush1.bf16.msra.mxu0 %v928
        %1236 = vmatprep.subr.bf16.mxu0 0
        %1237 = vmatpush1.bf16.msra.mxu0 %v935
        %1238 = vmatprep.subr.bf16.mxu0 0
        %1239 = vmatpush1.bf16.msra.mxu0 %v942
        %1240 = vmatprep.subr.bf16.mxu0 0
        %1241 = vmatpush1.bf16.msra.mxu0 %v949
        %1242 = vmatprep.subr.bf16.mxu0 0
        %1243 = vmatpush1.bf16.msra.mxu0 %v956
        %1244 = vmatprep.subr.bf16.mxu0 0
        %1245 = vmatpush1.bf16.msra.mxu0 %v963
        %1246 = vmatprep.subr.bf16.mxu0 0
        %1247 = vmatpush1.bf16.msra.mxu0 %v970
        %1248 = vmatprep.subr.bf16.mxu0 0
        %1249 = vmatpush1.bf16.msra.mxu0 %v977
        %1250 = vmatprep.subr.bf16.mxu0 0
        %1251 = vmatpush1.bf16.msra.mxu0 %v984
        %1252 = vmatprep.mubr.bf16.mxu0 %v355
        %1253 = vmatmul.mubr.bf16.gmra.mrb[0].mxu0 %v354
        %v1254 = vpop.f32.mrb[0].mxu0
        %v1255 = vadd.f32 %v513, %v1254
        %v1256 = vpop.f32.mrb[0].mxu0
        %v1257 = vpop.f32.mrb[0].mxu0
        %v1258 = vpop.f32.mrb[0].mxu0
        %1259 = vdwg.mxu0
        %v1260 = vmul.f32 %v1132, 0.5
        %v1261 = vmul.f32 %v1134, 0.5
        %v1262 = vmul.f32 %v1173, 0.5
        %v1263 = vmul.f32 %v1175, 0.5
        %v1264 = vmul.f32 %v1214, 0.5
        %v1265 = vmul.f32 %v1216, 0.5
        %v1266 = vmul.f32 %v1255, 0.5
        %v1267 = vmul.f32 %v1132, 0.70710677
        %v1268 = vmul.f32 %v1134, 0.70710677
        %v1269 = vmul.f32 %v1173, 0.70710677
        %v1270 = vmul.f32 %v1175, 0.70710677
        %v1271 = vmul.f32 %v1214, 0.70710677
        %v1272 = vmul.f32 %v1216, 0.70710677
        %v1273 = vmul.f32 %v1255, 0.70710677
        %vm1274 = vcmp.ge.f32.partialorder %v1267, 0.0
        %vm1275 = vcmp.ge.f32.partialorder %v1268, 0.0
        %vm1276 = vcmp.ge.f32.partialorder %v1269, 0.0
        %vm1277 = vcmp.ge.f32.partialorder %v1270, 0.0
        %vm1278 = vcmp.ge.f32.partialorder %v1271, 0.0
        %vm1279 = vcmp.ge.f32.partialorder %v1272, 0.0
        %vm1280 = vcmp.ge.f32.partialorder %v1273, 0.0
        %v1281 = vsel %vm1274, 1.0, -1.0
        %v1282 = vsel %vm1275, 1.0, -1.0
        %v1283 = vsel %vm1276, 1.0, -1.0
        %v1284 = vsel %vm1277, 1.0, -1.0
        %v1285 = vsel %vm1278, 1.0, -1.0
        %v1286 = vsel %vm1279, 1.0, -1.0
        %v1287 = vsel %vm1280, 1.0, -1.0
        %v1288 = vand.u32 2147483647, %v1267
        %v1289 = vand.u32 2147483647, %v1268
        %v1290 = vand.u32 2147483647, %v1269
        %v1291 = vand.u32 2147483647, %v1270
        %v1292 = vand.u32 2147483647, %v1271
        %v1293 = vand.u32 2147483647, %v1272
        %v1294 = vand.u32 2147483647, %v1273
        %v1295 = vmul.f32 %v1288, 0.3275911
        %v1296 = vmul.f32 %v1289, 0.3275911
        %v1297 = vmul.f32 %v1290, 0.3275911
        %v1298 = vmul.f32 %v1291, 0.3275911
        %v1299 = vmul.f32 %v1292, 0.3275911
        %v1300 = vmul.f32 %v1293, 0.3275911
        %v1301 = vmul.f32 %v1294, 0.3275911
        %v1302 = vadd.f32 %v1295, 1.0
        %v1303 = vadd.f32 %v1296, 1.0
        %v1304 = vadd.f32 %v1297, 1.0
        %v1305 = vadd.f32 %v1298, 1.0
        %v1306 = vadd.f32 %v1299, 1.0
        %v1307 = vadd.f32 %v1300, 1.0
        %v1308 = vadd.f32 %v1301, 1.0
        %v1309 = vrcp.pop %v1302
        %v1310 = vrcp.pop %v1303
        %v1311 = vrcp.pop %v1304
        %v1312 = vrcp.pop %v1305
        %v1313 = vrcp.pop %v1306
        %v1314 = vrcp.pop %v1307
        %v1315 = vrcp.pop %v1308
        %v1316 = vmul.f32 %v1309, 1.0614054
        %v1317 = vmul.f32 %v1310, 1.0614054
        %v1318 = vmul.f32 %v1311, 1.0614054
        %v1319 = vmul.f32 %v1312, 1.0614054
        %v1320 = vmul.f32 %v1313, 1.0614054
        %v1321 = vmul.f32 %v1314, 1.0614054
        %v1322 = vmul.f32 %v1315, 1.0614054
        %v1323 = vadd.f32 %v1316, -1.4531521
        %v1324 = vadd.f32 %v1317, -1.4531521
        %v1325 = vadd.f32 %v1318, -1.4531521
        %v1326 = vadd.f32 %v1319, -1.4531521
        %v1327 = vadd.f32 %v1320, -1.4531521
        %v1328 = vadd.f32 %v1321, -1.4531521
        %v1329 = vadd.f32 %v1322, -1.4531521
        %v1330 = vmul.f32 %v1323, %v1309
        %v1331 = vmul.f32 %v1324, %v1310
        %v1332 = vmul.f32 %v1325, %v1311
        %v1333 = vmul.f32 %v1326, %v1312
        %v1334 = vmul.f32 %v1327, %v1313
        %v1335 = vmul.f32 %v1328, %v1314
        %v1336 = vmul.f32 %v1329, %v1315
        %v1337 = vadd.f32 %v1330, 1.4214138
        %v1338 = vadd.f32 %v1331, 1.4214138
        %v1339 = vadd.f32 %v1332, 1.4214138
        %v1340 = vadd.f32 %v1333, 1.4214138
        %v1341 = vadd.f32 %v1334, 1.4214138
        %v1342 = vadd.f32 %v1335, 1.4214138
        %v1343 = vadd.f32 %v1336, 1.4214138
        %v1344 = vmul.f32 %v1337, %v1309
        %v1345 = vmul.f32 %v1338, %v1310
        %v1346 = vmul.f32 %v1339, %v1311
        %v1347 = vmul.f32 %v1340, %v1312
        %v1348 = vmul.f32 %v1341, %v1313
        %v1349 = vmul.f32 %v1342, %v1314
        %v1350 = vmul.f32 %v1343, %v1315
        %v1351 = vadd.f32 %v1344, -0.28449672
        %v1352 = vadd.f32 %v1345, -0.28449672
        %v1353 = vadd.f32 %v1346, -0.28449672
        %v1354 = vadd.f32 %v1347, -0.28449672
        %v1355 = vadd.f32 %v1348, -0.28449672
        %v1356 = vadd.f32 %v1349, -0.28449672
        %v1357 = vadd.f32 %v1350, -0.28449672
        %v1358 = vmul.f32 %v1351, %v1309
        %v1359 = vmul.f32 %v1352, %v1310
        %v1360 = vmul.f32 %v1353, %v1311
        %v1361 = vmul.f32 %v1354, %v1312
        %v1362 = vmul.f32 %v1355, %v1313
        %v1363 = vmul.f32 %v1356, %v1314
        %v1364 = vmul.f32 %v1357, %v1315
        %v1365 = vadd.f32 %v1358, 0.2548296
        %v1366 = vadd.f32 %v1359, 0.2548296
        %v1367 = vadd.f32 %v1360, 0.2548296
        %v1368 = vadd.f32 %v1361, 0.2548296
        %v1369 = vadd.f32 %v1362, 0.2548296
        %v1370 = vadd.f32 %v1363, 0.2548296
        %v1371 = vadd.f32 %v1364, 0.2548296
        %v1372 = vmul.f32 %v1365, %v1309
        %v1373 = vmul.f32 %v1366, %v1310
        %v1374 = vmul.f32 %v1367, %v1311
        %v1375 = vmul.f32 %v1368, %v1312
        %v1376 = vmul.f32 %v1369, %v1313
        %v1377 = vmul.f32 %v1370, %v1314
        %v1378 = vmul.f32 %v1371, %v1315
        %v1379 = vsub.f32 0.0, %v1288
        %v1380 = vsub.f32 0.0, %v1289
        %v1381 = vsub.f32 0.0, %v1290
        %v1382 = vsub.f32 0.0, %v1291
        %v1383 = vsub.f32 0.0, %v1292
        %v1384 = vsub.f32 0.0, %v1293
        %v1385 = vsub.f32 0.0, %v1294
        %v1386 = vmul.f32 %v1379, %v1288
        %v1387 = vmul.f32 %v1380, %v1289
        %v1388 = vmul.f32 %v1381, %v1290
        %v1389 = vmul.f32 %v1382, %v1291
        %v1390 = vmul.f32 %v1383, %v1292
        %v1391 = vmul.f32 %v1384, %v1293
        %v1392 = vmul.f32 %v1385, %v1294
        %v1393 = vmul.f32 %v1386, 1.442695
        %v1394 = vpow.pop %v1393
        %v1395 = vmul.f32 %v1387, 1.442695
        %v1396 = vpow.pop %v1395
        %v1397 = vmul.f32 %v1388, 1.442695
        %v1398 = vpow.pop %v1397
        %v1399 = vmul.f32 %v1389, 1.442695
        %v1400 = vpow.pop %v1399
        %v1401 = vmul.f32 %v1390, 1.442695
        %v1402 = vpow.pop %v1401
        %v1403 = vmul.f32 %v1391, 1.442695
        %v1404 = vpow.pop %v1403
        %v1405 = vmul.f32 %v1392, 1.442695
        %v1406 = vpow.pop %v1405
        %v1407 = vmul.f32 %v1372, %v1394
        %v1408 = vmul.f32 %v1373, %v1396
        %v1409 = vmul.f32 %v1374, %v1398
        %v1410 = vmul.f32 %v1375, %v1400
        %v1411 = vmul.f32 %v1376, %v1402
        %v1412 = vmul.f32 %v1377, %v1404
        %v1413 = vmul.f32 %v1378, %v1406
        %v1414 = vsub.f32 1.0, %v1407
        %v1415 = vsub.f32 1.0, %v1408
        %v1416 = vsub.f32 1.0, %v1409
        %v1417 = vsub.f32 1.0, %v1410
        %v1418 = vsub.f32 1.0, %v1411
        %v1419 = vsub.f32 1.0, %v1412
        %v1420 = vsub.f32 1.0, %v1413
        %v1421 = vmul.f32 %v1281, %v1414
        %v1422 = vmul.f32 %v1282, %v1415
        %v1423 = vmul.f32 %v1283, %v1416
        %v1424 = vmul.f32 %v1284, %v1417
        %v1425 = vmul.f32 %v1285, %v1418
        %v1426 = vmul.f32 %v1286, %v1419
        %v1427 = vmul.f32 %v1287, %v1420
        %v1428 = vadd.f32 %v1421, 1.0
        %v1429 = vadd.f32 %v1422, 1.0
        %v1430 = vadd.f32 %v1423, 1.0
        %v1431 = vadd.f32 %v1424, 1.0
        %v1432 = vadd.f32 %v1425, 1.0
        %v1433 = vadd.f32 %v1426, 1.0
        %v1434 = vadd.f32 %v1427, 1.0
        %v1435 = vmul.f32 %v1260, %v1428
        %v1436 = vmul.f32 %v1261, %v1429
        %v1437 = vmul.f32 %v1262, %v1430
        %v1438 = vmul.f32 %v1263, %v1431
        %v1439 = vmul.f32 %v1264, %v1432
        %v1440 = vmul.f32 %v1265, %v1433
        %v1441 = vmul.f32 %v1266, %v1434
        %v1442 = vpack.c.bf16 %v1435, %v1435
        %v1443 = vpack.c.bf16 %v1436, %v1436
        %v1444 = vpack.c.bf16 %v1437, %v1437
        %v1445 = vpack.c.bf16 %v1438, %v1438
        %v1446 = vpack.c.bf16 %v1439, %v1439
        %v1447 = vpack.c.bf16 %v1440, %v1440
        %v1448 = vpack.c.bf16 %v1441, %v1441
        %v1449 = vld [vmem:[#allocation7] sm:$0xff]
        %v1450 = vld [vmem:[#allocation7 + $0x8] sm:$0xff]
        %v1451 = vld [vmem:[#allocation7 + $0x10] sm:$0xff]
        %v1452 = vld [vmem:[#allocation7 + $0x18] sm:$0xff]
        %v1453 = vld [vmem:[#allocation7 + $0x20] sm:$0xff]
        %v1454 = vld [vmem:[#allocation7 + $0x28] sm:$0xff]
        %v1455 = vld [vmem:[#allocation7 + $0x30] sm:$0xff]
        %v1456 = vld [vmem:[#allocation7 + $0x38] sm:$0xff]
        %v1457 = vld [vmem:[#allocation7 + $0x40] sm:$0xff]
        %v1458 = vld [vmem:[#allocation7 + $0x48] sm:$0xff]
        %v1459 = vld [vmem:[#allocation7 + $0x50] sm:$0xff]
        %v1460 = vld [vmem:[#allocation7 + $0x58] sm:$0xff]
        %v1461 = vld [vmem:[#allocation7 + $0x60] sm:$0xff]
        %v1462 = vld [vmem:[#allocation7 + $0x68] sm:$0xff]
        %v1463 = vld [vmem:[#allocation7 + $0x70] sm:$0xff]
        %v1464 = vld [vmem:[#allocation7 + $0x78] sm:$0xff]
        %v1465 = vld [vmem:[#allocation7 + $0x80] sm:$0xff]
        %v1466 = vld [vmem:[#allocation7 + $0x88] sm:$0xff]
        %v1467 = vld [vmem:[#allocation7 + $0x90] sm:$0xff]
        %v1468 = vld [vmem:[#allocation7 + $0x98] sm:$0xff]
        %v1469 = vld [vmem:[#allocation7 + $0xa0] sm:$0xff]
        %v1470 = vld [vmem:[#allocation7 + $0xa8] sm:$0xff]
        %v1471 = vld [vmem:[#allocation7 + $0xb0] sm:$0xff]
        %v1472 = vld [vmem:[#allocation7 + $0xb8] sm:$0xff]
        %v1473 = vld [vmem:[#allocation7 + $0xc0] sm:$0xff]
        %v1474 = vld [vmem:[#allocation7 + $0xc8] sm:$0xff]
        %v1475 = vld [vmem:[#allocation7 + $0xd0] sm:$0xff]
        %v1476 = vld [vmem:[#allocation7 + $0xd8] sm:$0xff]
        %v1477 = vld [vmem:[#allocation7 + $0xe0] sm:$0xff]
        %v1478 = vld [vmem:[#allocation7 + $0xe8] sm:$0xff]
        %v1479 = vld [vmem:[#allocation7 + $0xf0] sm:$0xff]
        %v1480 = vld [vmem:[#allocation7 + $0xf8] sm:$0xff]
        %v1481 = vld [vmem:[#allocation7 + $0x100] sm:$0xff]
        %v1482 = vld [vmem:[#allocation7 + $0x108] sm:$0xff]
        %v1483 = vld [vmem:[#allocation7 + $0x110] sm:$0xff]
        %v1484 = vld [vmem:[#allocation7 + $0x118] sm:$0xff]
        %v1485 = vld [vmem:[#allocation7 + $0x120] sm:$0xff]
        %v1486 = vld [vmem:[#allocation7 + $0x128] sm:$0xff]
        %v1487 = vld [vmem:[#allocation7 + $0x130] sm:$0xff]
        %v1488 = vld [vmem:[#allocation7 + $0x138] sm:$0xff]
        %v1489 = vld [vmem:[#allocation7 + $0x140] sm:$0xff]
        %v1490 = vld [vmem:[#allocation7 + $0x148] sm:$0xff]
        %v1491 = vld [vmem:[#allocation7 + $0x150] sm:$0xff]
        %v1492 = vld [vmem:[#allocation7 + $0x158] sm:$0xff]
        %v1493 = vld [vmem:[#allocation7 + $0x160] sm:$0xff]
        %v1494 = vld [vmem:[#allocation7 + $0x168] sm:$0xff]
        %v1495 = vld [vmem:[#allocation7 + $0x170] sm:$0xff]
        %v1496 = vld [vmem:[#allocation7 + $0x178] sm:$0xff]
        %v1497 = vld [vmem:[#allocation7 + $0x180] sm:$0xff]
        %v1498 = vld [vmem:[#allocation7 + $0x188] sm:$0xff]
        %v1499 = vld [vmem:[#allocation7 + $0x190] sm:$0xff]
        %v1500 = vld [vmem:[#allocation7 + $0x198] sm:$0xff]
        %v1501 = vld [vmem:[#allocation7 + $0x1a0] sm:$0xff]
        %v1502 = vld [vmem:[#allocation7 + $0x1a8] sm:$0xff]
        %v1503 = vld [vmem:[#allocation7 + $0x1b0] sm:$0xff]
        %v1504 = vld [vmem:[#allocation7 + $0x1b8] sm:$0xff]
        %v1505 = vld [vmem:[#allocation7 + $0x1c0] sm:$0xff]
        %v1506 = vld [vmem:[#allocation7 + $0x1c8] sm:$0xff]
        %v1507 = vld [vmem:[#allocation7 + $0x1d0] sm:$0xff]
        %v1508 = vld [vmem:[#allocation7 + $0x1d8] sm:$0xff]
        %v1509 = vld [vmem:[#allocation7 + $0x1e0] sm:$0xff]
        %v1510 = vld [vmem:[#allocation7 + $0x1e8] sm:$0xff]
        %v1511 = vld [vmem:[#allocation7 + $0x1f0] sm:$0xff]
        %v1512 = vld [vmem:[#allocation7 + $0x1f8] sm:$0xff]
        %v1513 = vld [vmem:[#allocation7 + $0x200] sm:$0xff]
        %v1514 = vld [vmem:[#allocation7 + $0x208] sm:$0xff]
        %v1515 = vld [vmem:[#allocation7 + $0x210] sm:$0xff]
        %v1516 = vld [vmem:[#allocation7 + $0x218] sm:$0xff]
        %v1517 = vld [vmem:[#allocation7 + $0x220] sm:$0xff]
        %v1518 = vld [vmem:[#allocation7 + $0x228] sm:$0xff]
        %v1519 = vld [vmem:[#allocation7 + $0x230] sm:$0xff]
        %v1520 = vld [vmem:[#allocation7 + $0x238] sm:$0xff]
        %v1521 = vld [vmem:[#allocation7 + $0x240] sm:$0xff]
        %v1522 = vld [vmem:[#allocation7 + $0x248] sm:$0xff]
        %v1523 = vld [vmem:[#allocation7 + $0x250] sm:$0xff]
        %v1524 = vld [vmem:[#allocation7 + $0x258] sm:$0xff]
        %v1525 = vld [vmem:[#allocation7 + $0x260] sm:$0xff]
        %v1526 = vld [vmem:[#allocation7 + $0x268] sm:$0xff]
        %v1527 = vld [vmem:[#allocation7 + $0x270] sm:$0xff]
        %v1528 = vld [vmem:[#allocation7 + $0x278] sm:$0xff]
        %v1529 = vld [vmem:[#allocation7 + $0x280] sm:$0xff]
        %v1530 = vld [vmem:[#allocation7 + $0x288] sm:$0xff]
        %v1531 = vld [vmem:[#allocation7 + $0x290] sm:$0xff]
        %v1532 = vld [vmem:[#allocation7 + $0x298] sm:$0xff]
        %v1533 = vld [vmem:[#allocation7 + $0x2a0] sm:$0xff]
        %v1534 = vld [vmem:[#allocation7 + $0x2a8] sm:$0xff]
        %v1535 = vld [vmem:[#allocation7 + $0x2b0] sm:$0xff]
        %v1536 = vld [vmem:[#allocation7 + $0x2b8] sm:$0xff]
        %v1537 = vld [vmem:[#allocation7 + $0x2c0] sm:$0xff]
        %v1538 = vld [vmem:[#allocation7 + $0x2c8] sm:$0xff]
        %v1539 = vld [vmem:[#allocation7 + $0x2d0] sm:$0xff]
        %v1540 = vld [vmem:[#allocation7 + $0x2d8] sm:$0xff]
        %v1541 = vld [vmem:[#allocation7 + $0x2e0] sm:$0xff]
        %v1542 = vld [vmem:[#allocation7 + $0x2e8] sm:$0xff]
        %v1543 = vld [vmem:[#allocation7 + $0x2f0] sm:$0xff]
        %v1544 = vld [vmem:[#allocation7 + $0x2f8] sm:$0xff]
        %v1545 = vld [vmem:[#allocation7 + $0x300] sm:$0xff]
        %v1546 = vld [vmem:[#allocation7 + $0x308] sm:$0xff]
        %v1547 = vld [vmem:[#allocation7 + $0x310] sm:$0xff]
        %v1548 = vld [vmem:[#allocation7 + $0x318] sm:$0xff]
        %v1549 = vld [vmem:[#allocation7 + $0x320] sm:$0xff]
        %v1550 = vld [vmem:[#allocation7 + $0x328] sm:$0xff]
        %v1551 = vld [vmem:[#allocation7 + $0x330] sm:$0xff]
        %v1552 = vld [vmem:[#allocation7 + $0x338] sm:$0xff]
        %v1553 = vld [vmem:[#allocation7 + $0x340] sm:$0xff]
        %v1554 = vld [vmem:[#allocation7 + $0x348] sm:$0xff]
        %v1555 = vld [vmem:[#allocation7 + $0x350] sm:$0xff]
        %v1556 = vld [vmem:[#allocation7 + $0x358] sm:$0xff]
        %v1557 = vld [vmem:[#allocation7 + $0x360] sm:$0xff]
        %v1558 = vld [vmem:[#allocation7 + $0x368] sm:$0xff]
        %v1559 = vld [vmem:[#allocation7 + $0x370] sm:$0xff]
        %v1560 = vld [vmem:[#allocation7 + $0x378] sm:$0xff]
        %v1561 = vld [vmem:[%s4] sm:$0x3]
        %v1563 = vlaneseq
        %v1564 = vshrl.u32 %v1563, 7
        %v1565 = vsub.s32 0, %v1564
        %v1566 = vrot.slane %v1561, %v1565
        %v1567 = vlaneseq
        %v1568 = vshrl.u32 %v1567, 7
        %v1569 = vsub.s32 1, %v1568
        %v1570 = vrot.slane %v1561, %v1569
        %v1685 = vunpack.c.l.b16 %v1449
        %v1686 = vunpack.c.h.b16 %v1449
        %v1687 = vunpack.c.l.b16 %v1450
        %v1688 = vunpack.c.h.b16 %v1450
        %v1689 = vunpack.c.l.b16 %v1451
        %v1690 = vunpack.c.h.b16 %v1451
        %v1691 = vunpack.c.l.b16 %v1452
        %v1692 = vunpack.c.h.b16 %v1452
        %v1693 = vunpack.c.l.b16 %v1453
        %v1694 = vunpack.c.h.b16 %v1453
        %v1695 = vunpack.c.l.b16 %v1454
        %v1696 = vunpack.c.h.b16 %v1454
        %v1697 = vunpack.c.l.b16 %v1455
        %v1698 = vunpack.c.h.b16 %v1455
        %v1699 = vunpack.c.l.b16 %v1456
        %v1700 = vunpack.c.h.b16 %v1456
        %v1701 = vunpack.c.l.b16 %v1457
        %v1702 = vunpack.c.h.b16 %v1457
        %v1703 = vunpack.c.l.b16 %v1458
        %v1704 = vunpack.c.h.b16 %v1458
        %v1705 = vunpack.c.l.b16 %v1459
        %v1706 = vunpack.c.h.b16 %v1459
        %v1707 = vunpack.c.l.b16 %v1460
        %v1708 = vunpack.c.h.b16 %v1460
        %v1709 = vunpack.c.l.b16 %v1461
        %v1710 = vunpack.c.h.b16 %v1461
        %v1711 = vunpack.c.l.b16 %v1462
        %v1712 = vunpack.c.h.b16 %v1462
        %v1713 = vunpack.c.l.b16 %v1463
        %v1714 = vunpack.c.h.b16 %v1463
        %v1715 = vunpack.c.l.b16 %v1464
        %v1716 = vunpack.c.h.b16 %v1464
        %v1717 = vunpack.c.l.b16 %v1465
        %v1718 = vunpack.c.h.b16 %v1465
        %v1719 = vunpack.c.l.b16 %v1466
        %v1720 = vunpack.c.h.b16 %v1466
        %v1721 = vunpack.c.l.b16 %v1467
        %v1722 = vunpack.c.h.b16 %v1467
        %v1723 = vunpack.c.l.b16 %v1468
        %v1724 = vunpack.c.h.b16 %v1468
        %v1725 = vunpack.c.l.b16 %v1469
        %v1726 = vunpack.c.h.b16 %v1469
        %v1727 = vunpack.c.l.b16 %v1470
        %v1728 = vunpack.c.h.b16 %v1470
        %v1729 = vunpack.c.l.b16 %v1471
        %v1730 = vunpack.c.h.b16 %v1471
        %v1731 = vunpack.c.l.b16 %v1472
        %v1732 = vunpack.c.h.b16 %v1472
        %v1733 = vunpack.c.l.b16 %v1473
        %v1734 = vunpack.c.h.b16 %v1473
        %v1735 = vunpack.c.l.b16 %v1474
        %v1736 = vunpack.c.h.b16 %v1474
        %v1737 = vunpack.c.l.b16 %v1475
        %v1738 = vunpack.c.h.b16 %v1475
        %v1739 = vunpack.c.l.b16 %v1476
        %v1740 = vunpack.c.h.b16 %v1476
        %v1741 = vunpack.c.l.b16 %v1477
        %v1742 = vunpack.c.h.b16 %v1477
        %v1743 = vunpack.c.l.b16 %v1478
        %v1744 = vunpack.c.h.b16 %v1478
        %v1745 = vunpack.c.l.b16 %v1479
        %v1746 = vunpack.c.h.b16 %v1479
        %v1747 = vunpack.c.l.b16 %v1480
        %v1748 = vunpack.c.h.b16 %v1480
        %v1749 = vunpack.c.l.b16 %v1481
        %v1750 = vunpack.c.h.b16 %v1481
        %v1751 = vunpack.c.l.b16 %v1482
        %v1752 = vunpack.c.h.b16 %v1482
        %v1753 = vunpack.c.l.b16 %v1483
        %v1754 = vunpack.c.h.b16 %v1483
        %v1755 = vunpack.c.l.b16 %v1484
        %v1756 = vunpack.c.h.b16 %v1484
        %v1757 = vunpack.c.l.b16 %v1485
        %v1758 = vunpack.c.h.b16 %v1485
        %v1759 = vunpack.c.l.b16 %v1486
        %v1760 = vunpack.c.h.b16 %v1486
        %v1761 = vunpack.c.l.b16 %v1487
        %v1762 = vunpack.c.h.b16 %v1487
        %v1763 = vunpack.c.l.b16 %v1488
        %v1764 = vunpack.c.h.b16 %v1488
        %v1765 = vunpack.c.l.b16 %v1489
        %v1766 = vunpack.c.h.b16 %v1489
        %v1767 = vunpack.c.l.b16 %v1490
        %v1768 = vunpack.c.h.b16 %v1490
        %v1769 = vunpack.c.l.b16 %v1491
        %v1770 = vunpack.c.h.b16 %v1491
        %v1771 = vunpack.c.l.b16 %v1492
        %v1772 = vunpack.c.h.b16 %v1492
        %v1773 = vunpack.c.l.b16 %v1493
        %v1774 = vunpack.c.h.b16 %v1493
        %v1775 = vunpack.c.l.b16 %v1494
        %v1776 = vunpack.c.h.b16 %v1494
        %v1777 = vunpack.c.l.b16 %v1495
        %v1778 = vunpack.c.h.b16 %v1495
        %v1779 = vunpack.c.l.b16 %v1496
        %v1780 = vunpack.c.h.b16 %v1496
        %v1781 = vunpack.c.l.b16 %v1497
        %v1782 = vunpack.c.h.b16 %v1497
        %v1783 = vunpack.c.l.b16 %v1498
        %v1784 = vunpack.c.h.b16 %v1498
        %v1785 = vunpack.c.l.b16 %v1499
        %v1786 = vunpack.c.h.b16 %v1499
        %v1787 = vunpack.c.l.b16 %v1500
        %v1788 = vunpack.c.h.b16 %v1500
        %v1789 = vunpack.c.l.b16 %v1501
        %v1790 = vunpack.c.h.b16 %v1501
        %v1791 = vunpack.c.l.b16 %v1502
        %v1792 = vunpack.c.h.b16 %v1502
        %v1793 = vunpack.c.l.b16 %v1503
        %v1794 = vunpack.c.h.b16 %v1503
        %v1795 = vunpack.c.l.b16 %v1504
        %v1796 = vunpack.c.h.b16 %v1504
        %v1797 = vunpack.c.l.b16 %v1505
        %v1798 = vunpack.c.h.b16 %v1505
        %v1799 = vunpack.c.l.b16 %v1506
        %v1800 = vunpack.c.h.b16 %v1506
        %v1801 = vunpack.c.l.b16 %v1507
        %v1802 = vunpack.c.h.b16 %v1507
        %v1803 = vunpack.c.l.b16 %v1508
        %v1804 = vunpack.c.h.b16 %v1508
        %v1805 = vunpack.c.l.b16 %v1509
        %v1806 = vunpack.c.h.b16 %v1509
        %v1807 = vunpack.c.l.b16 %v1510
        %v1808 = vunpack.c.h.b16 %v1510
        %v1809 = vunpack.c.l.b16 %v1511
        %v1810 = vunpack.c.h.b16 %v1511
        %v1811 = vunpack.c.l.b16 %v1512
        %v1812 = vunpack.c.h.b16 %v1512
        %v1813 = vunpack.c.l.b16 %v1513
        %v1814 = vunpack.c.h.b16 %v1513
        %v1815 = vunpack.c.l.b16 %v1514
        %v1816 = vunpack.c.h.b16 %v1514
        %v1817 = vunpack.c.l.b16 %v1515
        %v1818 = vunpack.c.h.b16 %v1515
        %v1819 = vunpack.c.l.b16 %v1516
        %v1820 = vunpack.c.h.b16 %v1516
        %v1821 = vunpack.c.l.b16 %v1517
        %v1822 = vunpack.c.h.b16 %v1517
        %v1823 = vunpack.c.l.b16 %v1518
        %v1824 = vunpack.c.h.b16 %v1518
        %v1825 = vunpack.c.l.b16 %v1519
        %v1826 = vunpack.c.h.b16 %v1519
        %v1827 = vunpack.c.l.b16 %v1520
        %v1828 = vunpack.c.h.b16 %v1520
        %v1829 = vunpack.c.l.b16 %v1521
        %v1830 = vunpack.c.h.b16 %v1521
        %v1831 = vunpack.c.l.b16 %v1522
        %v1832 = vunpack.c.h.b16 %v1522
        %v1833 = vunpack.c.l.b16 %v1523
        %v1834 = vunpack.c.h.b16 %v1523
        %v1835 = vunpack.c.l.b16 %v1524
        %v1836 = vunpack.c.h.b16 %v1524
        %v1837 = vunpack.c.l.b16 %v1525
        %v1838 = vunpack.c.h.b16 %v1525
        %v1839 = vunpack.c.l.b16 %v1526
        %v1840 = vunpack.c.h.b16 %v1526
        %v1841 = vunpack.c.l.b16 %v1527
        %v1842 = vunpack.c.h.b16 %v1527
        %v1843 = vunpack.c.l.b16 %v1528
        %v1844 = vunpack.c.h.b16 %v1528
        %v1845 = vunpack.c.l.b16 %v1529
        %v1846 = vunpack.c.h.b16 %v1529
        %v1847 = vunpack.c.l.b16 %v1530
        %v1848 = vunpack.c.h.b16 %v1530
        %v1849 = vunpack.c.l.b16 %v1531
        %v1850 = vunpack.c.h.b16 %v1531
        %v1851 = vunpack.c.l.b16 %v1532
        %v1852 = vunpack.c.h.b16 %v1532
        %v1853 = vunpack.c.l.b16 %v1533
        %v1854 = vunpack.c.h.b16 %v1533
        %v1855 = vunpack.c.l.b16 %v1534
        %v1856 = vunpack.c.h.b16 %v1534
        %v1857 = vunpack.c.l.b16 %v1535
        %v1858 = vunpack.c.h.b16 %v1535
        %v1859 = vunpack.c.l.b16 %v1536
        %v1860 = vunpack.c.h.b16 %v1536
        %v1861 = vunpack.c.l.b16 %v1537
        %v1862 = vunpack.c.h.b16 %v1537
        %v1863 = vunpack.c.l.b16 %v1538
        %v1864 = vunpack.c.h.b16 %v1538
        %v1865 = vunpack.c.l.b16 %v1539
        %v1866 = vunpack.c.h.b16 %v1539
        %v1867 = vunpack.c.l.b16 %v1540
        %v1868 = vunpack.c.h.b16 %v1540
        %v1869 = vunpack.c.l.b16 %v1541
        %v1870 = vunpack.c.h.b16 %v1541
        %v1871 = vunpack.c.l.b16 %v1542
        %v1872 = vunpack.c.h.b16 %v1542
        %v1873 = vunpack.c.l.b16 %v1543
        %v1874 = vunpack.c.h.b16 %v1543
        %v1875 = vunpack.c.l.b16 %v1544
        %v1876 = vunpack.c.h.b16 %v1544
        %v1877 = vunpack.c.l.b16 %v1545
        %v1878 = vunpack.c.h.b16 %v1545
        %v1879 = vunpack.c.l.b16 %v1546
        %v1880 = vunpack.c.h.b16 %v1546
        %v1881 = vunpack.c.l.b16 %v1547
        %v1882 = vunpack.c.h.b16 %v1547
        %v1883 = vunpack.c.l.b16 %v1548
        %v1884 = vunpack.c.h.b16 %v1548
        %v1885 = vunpack.c.l.b16 %v1549
        %v1886 = vunpack.c.h.b16 %v1549
        %v1887 = vunpack.c.l.b16 %v1550
        %v1888 = vunpack.c.h.b16 %v1550
        %v1889 = vunpack.c.l.b16 %v1551
        %v1890 = vunpack.c.h.b16 %v1551
        %v1891 = vunpack.c.l.b16 %v1552
        %v1892 = vunpack.c.h.b16 %v1552
        %v1893 = vunpack.c.l.b16 %v1553
        %v1894 = vunpack.c.h.b16 %v1553
        %v1895 = vunpack.c.l.b16 %v1554
        %v1896 = vunpack.c.h.b16 %v1554
        %v1897 = vunpack.c.l.b16 %v1555
        %v1898 = vunpack.c.h.b16 %v1555
        %v1899 = vunpack.c.l.b16 %v1556
        %v1900 = vunpack.c.h.b16 %v1556
        %v1901 = vunpack.c.l.b16 %v1557
        %v1902 = vunpack.c.h.b16 %v1557
        %v1903 = vunpack.c.l.b16 %v1558
        %v1904 = vunpack.c.h.b16 %v1558
        %v1905 = vunpack.c.l.b16 %v1559
        %v1906 = vunpack.c.h.b16 %v1559
        %v1907 = vunpack.c.l.b16 %v1560
        %v1908 = vunpack.c.h.b16 %v1560
        %v1909 = vpack.c.b16 %v1687, %v1685
        %v1910 = vpack.c.b16 %v1688, %v1686
        %v1911 = vpack.c.b16 %v1691, %v1689
        %v1912 = vpack.c.b16 %v1692, %v1690
        %v1913 = vpack.c.b16 %v1695, %v1693
        %v1914 = vpack.c.b16 %v1696, %v1694
        %v1915 = vpack.c.b16 %v1699, %v1697
        %v1916 = vpack.c.b16 %v1700, %v1698
        %v1917 = vpack.c.b16 %v1703, %v1701
        %v1918 = vpack.c.b16 %v1704, %v1702
        %v1919 = vpack.c.b16 %v1707, %v1705
        %v1920 = vpack.c.b16 %v1708, %v1706
        %v1921 = vpack.c.b16 %v1711, %v1709
        %v1922 = vpack.c.b16 %v1712, %v1710
        %v1923 = vpack.c.b16 %v1715, %v1713
        %v1924 = vpack.c.b16 %v1716, %v1714
        %v1925 = vpack.c.b16 %v1719, %v1717
        %v1926 = vpack.c.b16 %v1720, %v1718
        %v1927 = vpack.c.b16 %v1723, %v1721
        %v1928 = vpack.c.b16 %v1724, %v1722
        %v1929 = vpack.c.b16 %v1727, %v1725
        %v1930 = vpack.c.b16 %v1728, %v1726
        %v1931 = vpack.c.b16 %v1731, %v1729
        %v1932 = vpack.c.b16 %v1732, %v1730
        %v1933 = vpack.c.b16 %v1735, %v1733
        %v1934 = vpack.c.b16 %v1736, %v1734
        %v1935 = vpack.c.b16 %v1739, %v1737
        %v1936 = vpack.c.b16 %v1740, %v1738
        %v1937 = vpack.c.b16 %v1743, %v1741
        %v1938 = vpack.c.b16 %v1744, %v1742
        %v1939 = vpack.c.b16 %v1747, %v1745
        %v1940 = vpack.c.b16 %v1748, %v1746
        %v1941 = vpack.c.b16 %v1751, %v1749
        %v1942 = vpack.c.b16 %v1752, %v1750
        %v1943 = vpack.c.b16 %v1755, %v1753
        %v1944 = vpack.c.b16 %v1756, %v1754
        %v1945 = vpack.c.b16 %v1759, %v1757
        %v1946 = vpack.c.b16 %v1760, %v1758
        %v1947 = vpack.c.b16 %v1763, %v1761
        %v1948 = vpack.c.b16 %v1764, %v1762
        %v1949 = vpack.c.b16 %v1767, %v1765
        %v1950 = vpack.c.b16 %v1768, %v1766
        %v1951 = vpack.c.b16 %v1771, %v1769
        %v1952 = vpack.c.b16 %v1772, %v1770
        %v1953 = vpack.c.b16 %v1775, %v1773
        %v1954 = vpack.c.b16 %v1776, %v1774
        %v1955 = vpack.c.b16 %v1779, %v1777
        %v1956 = vpack.c.b16 %v1780, %v1778
        %v1957 = vpack.c.b16 %v1783, %v1781
        %v1958 = vpack.c.b16 %v1784, %v1782
        %v1959 = vpack.c.b16 %v1787, %v1785
        %v1960 = vpack.c.b16 %v1788, %v1786
        %v1961 = vpack.c.b16 %v1791, %v1789
        %v1962 = vpack.c.b16 %v1792, %v1790
        %v1963 = vpack.c.b16 %v1795, %v1793
        %v1964 = vpack.c.b16 %v1796, %v1794
        %v1965 = vpack.c.b16 %v1799, %v1797
        %v1966 = vpack.c.b16 %v1800, %v1798
        %v1967 = vpack.c.b16 %v1803, %v1801
        %v1968 = vpack.c.b16 %v1804, %v1802
        %v1969 = vpack.c.b16 %v1807, %v1805
        %v1970 = vpack.c.b16 %v1808, %v1806
        %v1971 = vpack.c.b16 %v1811, %v1809
        %v1972 = vpack.c.b16 %v1812, %v1810
        %v1973 = vpack.c.b16 %v1815, %v1813
        %v1974 = vpack.c.b16 %v1816, %v1814
        %v1975 = vpack.c.b16 %v1819, %v1817
        %v1976 = vpack.c.b16 %v1820, %v1818
        %v1977 = vpack.c.b16 %v1823, %v1821
        %v1978 = vpack.c.b16 %v1824, %v1822
        %v1979 = vpack.c.b16 %v1827, %v1825
        %v1980 = vpack.c.b16 %v1828, %v1826
        %v1981 = vpack.c.b16 %v1831, %v1829
        %v1982 = vpack.c.b16 %v1832, %v1830
        %v1983 = vpack.c.b16 %v1835, %v1833
        %v1984 = vpack.c.b16 %v1836, %v1834
        %v1985 = vpack.c.b16 %v1839, %v1837
        %v1986 = vpack.c.b16 %v1840, %v1838
        %v1987 = vpack.c.b16 %v1843, %v1841
        %v1988 = vpack.c.b16 %v1844, %v1842
        %v1989 = vpack.c.b16 %v1847, %v1845
        %v1990 = vpack.c.b16 %v1848, %v1846
        %v1991 = vpack.c.b16 %v1851, %v1849
        %v1992 = vpack.c.b16 %v1852, %v1850
        %v1993 = vpack.c.b16 %v1855, %v1853
        %v1994 = vpack.c.b16 %v1856, %v1854
        %v1995 = vpack.c.b16 %v1859, %v1857
        %v1996 = vpack.c.b16 %v1860, %v1858
        %v1997 = vpack.c.b16 %v1863, %v1861
        %v1998 = vpack.c.b16 %v1864, %v1862
        %v1999 = vpack.c.b16 %v1867, %v1865
        %v2000 = vpack.c.b16 %v1868, %v1866
        %v2001 = vpack.c.b16 %v1871, %v1869
        %v2002 = vpack.c.b16 %v1872, %v1870
        %v2003 = vpack.c.b16 %v1875, %v1873
        %v2004 = vpack.c.b16 %v1876, %v1874
        %v2005 = vpack.c.b16 %v1879, %v1877
        %v2006 = vpack.c.b16 %v1880, %v1878
        %v2007 = vpack.c.b16 %v1883, %v1881
        %v2008 = vpack.c.b16 %v1884, %v1882
        %v2009 = vpack.c.b16 %v1887, %v1885
        %v2010 = vpack.c.b16 %v1888, %v1886
        %v2011 = vpack.c.b16 %v1891, %v1889
        %v2012 = vpack.c.b16 %v1892, %v1890
        %v2013 = vpack.c.b16 %v1895, %v1893
        %v2014 = vpack.c.b16 %v1896, %v1894
        %v2015 = vpack.c.b16 %v1899, %v1897
        %v2016 = vpack.c.b16 %v1900, %v1898
        %v2017 = vpack.c.b16 %v1903, %v1901
        %v2018 = vpack.c.b16 %v1904, %v1902
        %v2019 = vpack.c.b16 %v1907, %v1905
        %v2020 = vpack.c.b16 %v1908, %v1906
        %2133 = vmatprep.subr.bf16.mxu0 %v1910
        %2134 = vmatpush1.bf16.msra.mxu0 %v1909
        %2135 = vmatprep.subr.bf16.mxu0 %v1912
        %2136 = vmatpush1.bf16.msra.mxu0 %v1911
        %2137 = vmatprep.subr.bf16.mxu0 %v1914
        %2138 = vmatpush1.bf16.msra.mxu0 %v1913
        %2139 = vmatprep.subr.bf16.mxu0 %v1916
        %2140 = vmatpush1.bf16.msra.mxu0 %v1915
        %2141 = vmatprep.subr.bf16.mxu0 %v1918
        %2142 = vmatpush1.bf16.msra.mxu0 %v1917
        %2143 = vmatprep.subr.bf16.mxu0 %v1920
        %2144 = vmatpush1.bf16.msra.mxu0 %v1919
        %2145 = vmatprep.subr.bf16.mxu0 %v1922
        %2146 = vmatpush1.bf16.msra.mxu0 %v1921
        %2147 = vmatprep.subr.bf16.mxu0 %v1924
        %2148 = vmatpush1.bf16.msra.mxu0 %v1923
        %2149 = vmatprep.subr.bf16.mxu0 %v1926
        %2150 = vmatpush1.bf16.msra.mxu0 %v1925
        %2151 = vmatprep.subr.bf16.mxu0 %v1928
        %2152 = vmatpush1.bf16.msra.mxu0 %v1927
        %2153 = vmatprep.subr.bf16.mxu0 %v1930
        %2154 = vmatpush1.bf16.msra.mxu0 %v1929
        %2155 = vmatprep.subr.bf16.mxu0 %v1932
        %2156 = vmatpush1.bf16.msra.mxu0 %v1931
        %2157 = vmatprep.subr.bf16.mxu0 %v1934
        %2158 = vmatpush1.bf16.msra.mxu0 %v1933
        %2159 = vmatprep.subr.bf16.mxu0 %v1936
        %2160 = vmatpush1.bf16.msra.mxu0 %v1935
        %2161 = vmatprep.subr.bf16.mxu0 %v1938
        %2162 = vmatpush1.bf16.msra.mxu0 %v1937
        %2163 = vmatprep.subr.bf16.mxu0 %v1940
        %2164 = vmatpush1.bf16.msra.mxu0 %v1939
        %2165 = vmatprep.mubr.bf16.mxu0 %v1443
        %2166 = vmatmul.mubr.bf16.gmra.mrb[0].mxu0 %v1442
        %v2167 = vpop.f32.mrb[0].mxu0
        %v2168 = vadd.f32 %v1566, %v2167
        %v2169 = vpop.f32.mrb[0].mxu0
        %v2170 = vadd.f32 %v1570, %v2169
        %v2171 = vpop.f32.mrb[0].mxu0
        %v2172 = vpop.f32.mrb[0].mxu0
        %2173 = vdwg.mxu0
        %2174 = vmatprep.subr.bf16.mxu0 %v1942
        %2175 = vmatpush1.bf16.msra.mxu0 %v1941
        %2176 = vmatprep.subr.bf16.mxu0 %v1944
        %2177 = vmatpush1.bf16.msra.mxu0 %v1943
        %2178 = vmatprep.subr.bf16.mxu0 %v1946
        %2179 = vmatpush1.bf16.msra.mxu0 %v1945
        %2180 = vmatprep.subr.bf16.mxu0 %v1948
        %2181 = vmatpush1.bf16.msra.mxu0 %v1947
        %2182 = vmatprep.subr.bf16.mxu0 %v1950
        %2183 = vmatpush1.bf16.msra.mxu0 %v1949
        %2184 = vmatprep.subr.bf16.mxu0 %v1952
        %2185 = vmatpush1.bf16.msra.mxu0 %v1951
        %2186 = vmatprep.subr.bf16.mxu0 %v1954
        %2187 = vmatpush1.bf16.msra.mxu0 %v1953
        %2188 = vmatprep.subr.bf16.mxu0 %v1956
        %2189 = vmatpush1.bf16.msra.mxu0 %v1955
        %2190 = vmatprep.subr.bf16.mxu0 %v1958
        %2191 = vmatpush1.bf16.msra.mxu0 %v1957
        %2192 = vmatprep.subr.bf16.mxu0 %v1960
        %2193 = vmatpush1.bf16.msra.mxu0 %v1959
        %2194 = vmatprep.subr.bf16.mxu0 %v1962
        %2195 = vmatpush1.bf16.msra.mxu0 %v1961
        %2196 = vmatprep.subr.bf16.mxu0 %v1964
        %2197 = vmatpush1.bf16.msra.mxu0 %v1963
        %2198 = vmatprep.subr.bf16.mxu0 %v1966
        %2199 = vmatpush1.bf16.msra.mxu0 %v1965
        %2200 = vmatprep.subr.bf16.mxu0 %v1968
        %2201 = vmatpush1.bf16.msra.mxu0 %v1967
        %2202 = vmatprep.subr.bf16.mxu0 %v1970
        %2203 = vmatpush1.bf16.msra.mxu0 %v1969
        %2204 = vmatprep.subr.bf16.mxu0 %v1972
        %2205 = vmatpush1.bf16.msra.mxu0 %v1971
        %2206 = vmatprep.mubr.bf16.mxu0 %v1445
        %2207 = vmatmul.mubr.bf16.gmra.mrb[0].mxu0 %v1444
        %v2208 = vpop.f32.mrb[0].mxu0
        %v2209 = vadd.f32 %v2168, %v2208
        %v2210 = vpop.f32.mrb[0].mxu0
        %v2211 = vadd.f32 %v2170, %v2210
        %v2212 = vpop.f32.mrb[0].mxu0
        %v2213 = vpop.f32.mrb[0].mxu0
        %2214 = vdwg.mxu0
        %2215 = vmatprep.subr.bf16.mxu0 %v1974
        %2216 = vmatpush1.bf16.msra.mxu0 %v1973
        %2217 = vmatprep.subr.bf16.mxu0 %v1976
        %2218 = vmatpush1.bf16.msra.mxu0 %v1975
        %2219 = vmatprep.subr.bf16.mxu0 %v1978
        %2220 = vmatpush1.bf16.msra.mxu0 %v1977
        %2221 = vmatprep.subr.bf16.mxu0 %v1980
        %2222 = vmatpush1.bf16.msra.mxu0 %v1979
        %2223 = vmatprep.subr.bf16.mxu0 %v1982
        %2224 = vmatpush1.bf16.msra.mxu0 %v1981
        %2225 = vmatprep.subr.bf16.mxu0 %v1984
        %2226 = vmatpush1.bf16.msra.mxu0 %v1983
        %2227 = vmatprep.subr.bf16.mxu0 %v1986
        %2228 = vmatpush1.bf16.msra.mxu0 %v1985
        %2229 = vmatprep.subr.bf16.mxu0 %v1988
        %2230 = vmatpush1.bf16.msra.mxu0 %v1987
        %2231 = vmatprep.subr.bf16.mxu0 %v1990
        %2232 = vmatpush1.bf16.msra.mxu0 %v1989
        %2233 = vmatprep.subr.bf16.mxu0 %v1992
        %2234 = vmatpush1.bf16.msra.mxu0 %v1991
        %2235 = vmatprep.subr.bf16.mxu0 %v1994
        %2236 = vmatpush1.bf16.msra.mxu0 %v1993
        %2237 = vmatprep.subr.bf16.mxu0 %v1996
        %2238 = vmatpush1.bf16.msra.mxu0 %v1995
        %2239 = vmatprep.subr.bf16.mxu0 %v1998
        %2240 = vmatpush1.bf16.msra.mxu0 %v1997
        %2241 = vmatprep.subr.bf16.mxu0 %v2000
        %2242 = vmatpush1.bf16.msra.mxu0 %v1999
        %2243 = vmatprep.subr.bf16.mxu0 %v2002
        %2244 = vmatpush1.bf16.msra.mxu0 %v2001
        %2245 = vmatprep.subr.bf16.mxu0 %v2004
        %2246 = vmatpush1.bf16.msra.mxu0 %v2003
        %2247 = vmatprep.mubr.bf16.mxu0 %v1447
        %2248 = vmatmul.mubr.bf16.gmra.mrb[0].mxu0 %v1446
        %v2249 = vpop.f32.mrb[0].mxu0
        %v2250 = vadd.f32 %v2209, %v2249
        %v2251 = vpop.f32.mrb[0].mxu0
        %v2252 = vadd.f32 %v2211, %v2251
        %v2253 = vpop.f32.mrb[0].mxu0
        %v2254 = vpop.f32.mrb[0].mxu0
        %2255 = vdwg.mxu0
        %2256 = vmatprep.subr.bf16.mxu0 %v2006
        %2257 = vmatpush1.bf16.msra.mxu0 %v2005
        %2258 = vmatprep.subr.bf16.mxu0 %v2008
        %2259 = vmatpush1.bf16.msra.mxu0 %v2007
        %2260 = vmatprep.subr.bf16.mxu0 %v2010
        %2261 = vmatpush1.bf16.msra.mxu0 %v2009
        %2262 = vmatprep.subr.bf16.mxu0 %v2012
        %2263 = vmatpush1.bf16.msra.mxu0 %v2011
        %2264 = vmatprep.subr.bf16.mxu0 %v2014
        %2265 = vmatpush1.bf16.msra.mxu0 %v2013
        %2266 = vmatprep.subr.bf16.mxu0 %v2016
        %2267 = vmatpush1.bf16.msra.mxu0 %v2015
        %2268 = vmatprep.subr.bf16.mxu0 %v2018
        %2269 = vmatpush1.bf16.msra.mxu0 %v2017
        %2270 = vmatprep.subr.bf16.mxu0 %v2020
        %2271 = vmatpush1.bf16.msra.mxu0 %v2019
        %2272 = vmatprep.subr.bf16.mxu0 0
        %2273 = vmatpush1.bf16.msra.mxu0 0
        %2274 = vmatprep.subr.bf16.mxu0 0
        %2275 = vmatpush1.bf16.msra.mxu0 0
        %2276 = vmatprep.subr.bf16.mxu0 0
        %2277 = vmatpush1.bf16.msra.mxu0 0
        %2278 = vmatprep.subr.bf16.mxu0 0
        %2279 = vmatpush1.bf16.msra.mxu0 0
        %2280 = vmatprep.subr.bf16.mxu0 0
        %2281 = vmatpush1.bf16.msra.mxu0 0
        %2282 = vmatprep.subr.bf16.mxu0 0
        %2283 = vmatpush1.bf16.msra.mxu0 0
        %2284 = vmatprep.subr.bf16.mxu0 0
        %2285 = vmatpush1.bf16.msra.mxu0 0
        %2286 = vmatprep.subr.bf16.mxu0 0
        %2287 = vmatpush1.bf16.msra.mxu0 0
        %2288 = vmatprep.mubr.bf16.mxu0 0
        %2289 = vmatmul.mubr.bf16.gmra.mrb[0].mxu0 %v1448
        %v2290 = vpop.f32.mrb[0].mxu0
        %v2291 = vadd.f32 %v2250, %v2290
        %v2292 = vpop.f32.mrb[0].mxu0
        %v2293 = vadd.f32 %v2252, %v2292
        %v2294 = vpop.f32.mrb[0].mxu0
        %v2295 = vpop.f32.mrb[0].mxu0
        %2296 = vdwg.mxu0
        %v2297 = vadd.f32 %v2291, %v352
        %v2298 = vadd.f32 %v2293, %v353
        %v2299 = vadd.f32 %v2297, %v2298
        %2300 = vadd.xlane.f32.xlu0 %v2299
        %v2301 = vpop.xlane.xlu0 %2300
        %v2302 = vmul.f32 %v2301, 0.005
        %v2303 = vsub.f32 %v2297, %v2302
        %v2304 = vsub.f32 %v2298, %v2302
        %v2305 = vld [vmem:[%s7] sm:$0x3]
        %v2307 = vlaneseq
        %v2308 = vshrl.u32 %v2307, 7
        %v2309 = vsub.s32 0, %v2308
        %v2310 = vrot.slane %v2305, %v2309
        %v2311 = vlaneseq
        %v2312 = vshrl.u32 %v2311, 7
        %v2313 = vsub.s32 1, %v2312
        %v2314 = vrot.slane %v2305, %v2313
        %v2317 = vmul.f32 %v2303, %v2310
        %v2318 = vmul.f32 %v2304, %v2314
        %v2319 = vmul.f32 %v2317, %v2317
        %v2320 = vmul.f32 %v2318, %v2318
        %v2321 = vadd.f32 %v2319, %v2320
        %2322 = vadd.xlane.f32.xlu0 %v2321
        %v2323 = vpop.xlane.xlu0 %2322
        %v2324 = vmul.f32 %v2323, 0.005
        %v2325 = vadd.f32 %v2324, 1e-12
        %v2326 = vrsqrt.pop %v2325
        %v2327 = vmul.f32 %v2317, %v2326
        %v2328 = vmul.f32 %v2318, %v2326
        %v2329 = vld [vmem:[%s5] sm:$0x3]
        %v2331 = vlaneseq
        %v2332 = vshrl.u32 %v2331, 7
        %v2333 = vsub.s32 0, %v2332
        %v2334 = vrot.slane %v2329, %v2333
        %v2335 = vlaneseq
        %v2336 = vshrl.u32 %v2335, 7
        %v2337 = vsub.s32 1, %v2336
        %v2338 = vrot.slane %v2329, %v2337
        %v2341 = vmul.f32 %v2327, %v2334
        %v2342 = vmul.f32 %v2328, %v2338
        %v2343 = vld [vmem:[%s6] sm:$0x3]
        %v2345 = vlaneseq
        %v2346 = vshrl.u32 %v2345, 7
        %v2347 = vsub.s32 0, %v2346
        %v2348 = vrot.slane %v2343, %v2347
        %v2349 = vlaneseq
        %v2350 = vshrl.u32 %v2349, 7
        %v2351 = vsub.s32 1, %v2350
        %v2352 = vrot.slane %v2343, %v2351
        %v2355 = vadd.f32 %v2341, %v2348
        %v2356 = vadd.f32 %v2342, %v2352
        %2357 = vst [vmem:[%s350] sm:$0xff] %v2355
        %2358 = vst [vmem:[%s350 + $0x8] sm:$0xff] %v2356
        %s2359 = sand.u32 %s207, 1
        %s2360 = scalar_lea.sflag [#allocation4], %s2359
        %s2361 = sand.u32 %s207, 1
        %s2362 = smul.addr %s2361, 16
        %s2363 = scalar_lea.vmem [#allocation8], %s2362
        // Predicated region
        $region65: #{tpu_custom_call.1} parent=51 // pred_check
          %p2364 = pneg %p217
        $region66: #{tpu_custom_call.1} parent=51 // pred_check_branch
          %2366 = sbr.rel (%p2364) target = $region68
        $region67: #{tpu_custom_call.1} parent=51 // pred_region
          %s2368 = ssub.s32 256, 256
          %2369 = vsyncadd %s2360, %s2368
          %s2370 = smul.addr %s26, 2
          %s2371 = smul.addr %s2370, 128
          %s2372 = scalar_lea.hbm %s8, %s2371
          %s2374 = sshll.u32 %s2363, 4
          %s2375 = int_to_ptr.vmem [resolvable:$true] %s2374
          %2377 = dma.vmem_to_hbm [thread:$0]  %s2375, 256, %s2372, %s2360
        $region68: #{tpu_custom_call.1} parent=51 // pred_fallthru
          _
      $region52: #{tpu_custom_call.1} parent=5 // pred_fallthru
        _
      %p2378 = scmp.le.s32.totalorder 2, %s21
      // Predicated region
      $region69: #{tpu_custom_call.1} parent=5 // pred_check
        %p2379 = pneg %p2378
      $region70: #{tpu_custom_call.1} parent=5 // pred_check_branch
        %2381 = sbr.rel (%p2379) target = $region72
      $region71: #{tpu_custom_call.1} parent=5 // pred_region
        %s2382 = ssub.s32 %s21, 2
        // Predicated region
        $region73: #{tpu_custom_call.1} parent=71 // pred_check
          %p2383 = pneg %p223
        $region74: #{tpu_custom_call.1} parent=71 // pred_check_branch
          %2385 = sbr.rel (%p2383) target = $region76
        $region75: #{tpu_custom_call.1} parent=71 // pred_region
          %s2386 = sand.u32 %s208, 1
          %s2387 = scalar_lea.sflag [#allocation4], %s2386
          %s2388 = sand.u32 %s208, 1
          %s2389 = smul.addr %s2388, 16
          %s2390 = scalar_lea.vmem [#allocation8], %s2389
          %2391 = dma.done %s2387, 256
        $region76: #{tpu_custom_call.1} parent=71 // pred_fallthru
          _
      $region72: #{tpu_custom_call.1} parent=5 // pred_fallthru
        _
    $region6: #{tpu_custom_call.1} parent=1 // loop_footer
      %s25 = sadd.s32 1, %s21
    $region7: #{tpu_custom_call.1} parent=1 // loop_footer_branch
      %20 = sbr.rel target = $region3
    $region8: #{tpu_custom_call.1} parent=1 // loop_exit
      _
    %2392 = vsyncpa [#allocation3], 1
    %s2393 = scalar_lea.sflag [#allocation3], 1
    %2394 = vsyncpa %s2393, 1
    %2395 = vsyncpa [#allocation6], 1
    %2396 = vsyncpa [#allocation4], 1
    %s2397 = scalar_lea.sflag [#allocation4], 1
    %2398 = vsyncpa %s2397, 1

</llo_original>
